<compile_context>
chip_gen: v6e
topology: v6e:2x2x1
jax: 0.10.0
libtpu: 0.0.40
codegen_flags: <defaults>
</compile_context>

<pallas_src>
import functools

import jax
import jax.numpy as jnp
from jax.experimental import pallas as pl
from jax.experimental.pallas import tpu as pltpu

EPS = 1e-5          # nn.BatchNorm2d default eps
NEG_SLOPE = 0.2     # nn.LeakyReLU(negative_slope=0.2)


def _make_conv_stats_kernel(Cin, Cout, H, W, KH, KW, pad):
    """Conv (im2col, single MXU matmul) + fused per-channel sum/sumsq accumulation."""
    Ho = H + 2 * pad - KH + 1
    Wo = W + 2 * pad - KW + 1
    K = KH * KW * Cin

    def kernel(x_ref, w_ref, y_ref, stats_ref):
        # x_ref:     (Cin, H, W)     one image, NCHW-native (no wrapper transpose)
        # w_ref:     (Cout, K)       weight repacked as (co | kh, kw, ci)
        # y_ref:     (Cout, Ho*Wo)   lane-dense conv output (Ho*Wo on the lane axis)
        # stats_ref: (Cout, 2)       [:,0]=sum, [:,1]=sum-of-squares (resident accumulator)
        x = x_ref[...].astype(jnp.float32)

        # zero padding done in-kernel (VMEM only) instead of a wrapper jnp.pad HBM pass
        if pad > 0:
            zw = jnp.zeros((Cin, H, pad), jnp.float32)
            x = jnp.concatenate([zw, x, zw], axis=2)              # (Cin, H, W+2p)
            zh = jnp.zeros((Cin, pad, W + 2 * pad), jnp.float32)
            x = jnp.concatenate([zh, x, zh], axis=1)              # (Cin, H+2p, W+2p)

        # im2col: build one (K, Ho*Wo) patch matrix -> a single matmul with K=KH*KW*Cin
        cols = []
        for kh in range(KH):                                       # static unroll (9 taps)
            for kw in range(KW):
                cols.append(x[:, kh:kh + Ho, kw:kw + Wo])          # (Cin, Ho, Wo)
        patches = jnp.concatenate(cols, axis=0)                    # (K, Ho, Wo)
        patches = patches.reshape(K, Ho * Wo)                      # one in-VMEM relayout

        # Single MXU matmul: (Cout, K) @ (K, Ho*Wo) -> (Cout, Ho*Wo), f32 accumulate.
        # TODO(synk): bf16 MXU operands (v6e/v7x suggestion) kept f32 to preserve the
        #             1e-4 tolerance of the reference check.
        acc = jnp.dot(w_ref[...].astype(jnp.float32), patches,
                      preferred_element_type=jnp.float32)          # (Cout, Ho*Wo)
        y_ref[...] = acc                                           # lane-dense store

        # BatchNorm batch statistics fused into the conv pass, accumulated across the grid
        @pl.when(pl.program_id(0) == 0)
        def _init():
            stats_ref[...] = jnp.zeros_like(stats_ref)

        psum = jnp.sum(acc, axis=1, keepdims=True)                 # (Cout, 1)
        psumsq = jnp.sum(acc * acc, axis=1, keepdims=True)         # (Cout, 1)
        stats_ref[...] += jnp.concatenate([psum, psumsq], axis=1)

    return kernel


def _bn_lrelu_kernel(y_ref, scale_ref, shift_ref, o_ref):
    # y_ref/o_ref: (Cout, TL) lane-dense tiles; scale/shift: (Cout, 1) folded BN affine
    z = y_ref[...] * scale_ref[...] + shift_ref[...]
    o_ref[...] = jnp.where(z >= 0, z, NEG_SLOPE * z).astype(o_ref.dtype)


def _pick_lane_tile(hw, max_lanes=2048):
    """Largest lane tile that divides hw, stays 128-aligned (or falls back to full)."""
    if hw <= max_lanes or hw % 128 != 0:
        return hw
    best = 128
    d = 128
    while d <= max_lanes:
        if hw % d == 0:
            best = d
        d += 128
    return best


@functools.partial(jax.jit, static_argnames=("padding",))
def conv_bn_relu(x_nchw, weight_oihw, gamma, beta, padding=1):
    """ConvBNReLU forward pass. Inputs/outputs follow PyTorch NCHW / OIHW layouts."""
    N, Cin, H, W = x_nchw.shape
    Cout, _, KH, KW = weight_oihw.shape
    Ho = H + 2 * padding - KH + 1
    Wo = W + 2 * padding - KW + 1
    HW = Ho * Wo
    K = KH * KW * Cin

    # Only the tiny weight is repacked; the activation goes in as-is (no transpose / pad).
    w_mat = jnp.transpose(weight_oihw, (0, 2, 3, 1)).reshape(Cout, K).astype(jnp.float32)

    conv_kernel = _make_conv_stats_kernel(Cin, Cout, H, W, KH, KW, padding)
    y_flat, stats = pl.pallas_call(
        conv_kernel,
        out_shape=(jax.ShapeDtypeStruct((N, Cout, HW), jnp.float32),
                   jax.ShapeDtypeStruct((Cout, 2), jnp.float32)),
        grid=(N,),
        in_specs=[
            pl.BlockSpec((None, Cin, H, W), lambda n: (n, 0, 0, 0)),
            pl.BlockSpec((Cout, K), lambda n: (0, 0)),             # weight stays resident
        ],
        out_specs=(
            pl.BlockSpec((None, Cout, HW), lambda n: (n, 0, 0)),   # lane-dense output
            pl.BlockSpec((Cout, 2), lambda n: (0, 0)),             # stats accumulator
        ),
        compiler_params=pltpu.CompilerParams(
            # stats accumulate across the batch axis -> must stay "arbitrary"
            dimension_semantics=("arbitrary",)),
    )(x_nchw, w_mat)

    # Fold training-mode BN (biased batch stats) into one per-channel affine (tiny glue).
    cnt = jnp.float32(N * HW)
    mean = stats[:, 0] / cnt
    var = stats[:, 1] / cnt - mean * mean            # single-pass batch variance
    scale = gamma.reshape(-1).astype(jnp.float32) * jax.lax.rsqrt(var + EPS)
    shift = beta.reshape(-1).astype(jnp.float32) - mean * scale
    scale = scale.reshape(Cout, 1)
    shift = shift.reshape(Cout, 1)
    # TODO(synk): BatchNorm2d running_mean / running_var buffers are not produced/updated
    #             (forward activation only).

    TL = _pick_lane_tile(HW)
    out_flat = pl.pallas_call(
        _bn_lrelu_kernel,
        out_shape=jax.ShapeDtypeStruct((N, Cout, HW), jnp.float32),
        grid=(N, HW // TL),
        in_specs=[
            pl.BlockSpec((None, Cout, TL), lambda n, t: (n, 0, t)),
            pl.BlockSpec((Cout, 1), lambda n, t: (0, 0)),
            pl.BlockSpec((Cout, 1), lambda n, t: (0, 0)),
        ],
        out_specs=pl.BlockSpec((None, Cout, TL), lambda n, t: (n, 0, t)),
        compiler_params=pltpu.CompilerParams(
            dimension_semantics=("parallel", "parallel")),         # megacore friendly
    )(y_flat, scale, shift)

    # Row-major reinterpretation back to (N, Cout, Ho, Wo) == PyTorch NCHW.
    return out_flat.reshape(N, Cout, Ho, Wo)


def _reference(x_nchw, weight_oihw, gamma, beta, padding=1):
    """Plain-JAX reference mirroring the PyTorch module (training-mode BN)."""
    y = jax.lax.conv_general_dilated(
        x_nchw.astype(jnp.float32), weight_oihw.astype(jnp.float32),
        window_strides=(1, 1),
        padding=((padding, padding), (padding, padding)),
        dimension_numbers=("NCHW", "OIHW", "NCHW"))
    mean = jnp.mean(y, axis=(0, 2, 3), keepdims=True)
    var = jnp.mean(jnp.square(y - mean), axis=(0, 2, 3), keepdims=True)
    y = (y - mean) * jax.lax.rsqrt(var + EPS)
    y = y * gamma.reshape(1, -1, 1, 1) + beta.reshape(1, -1, 1, 1)
    return jnp.where(y >= 0, y, NEG_SLOPE * y)


if __name__ == "__main__":
    key = jax.random.PRNGKey(0)
    k_x, k_w, k_g, k_b = jax.random.split(key, 4)

    N, Cin, H, W = 2, 4, 16, 16
    Cout, KS = 8, 3

    x = jax.random.normal(k_x, (N, Cin, H, W), dtype=jnp.float32)
    weight = jax.random.normal(k_w, (Cout, Cin, KS, KS), dtype=jnp.float32) * 0.1
    gamma = 1.0 + 0.1 * jax.random.normal(k_g, (Cout,), dtype=jnp.float32)
    beta = 0.1 * jax.random.normal(k_b, (Cout,), dtype=jnp.float32)

    out = conv_bn_relu(x, weight, gamma, beta, padding=1)
    out = jax.block_until_ready(out)

    ref = _reference(x, weight, gamma, beta, padding=1)
    assert out.shape == (N, Cout, H, W), out.shape
    assert jnp.allclose(out, ref, atol=1e-4, rtol=1e-4), float(
        jnp.max(jnp.abs(out - ref)))

    print("KERNEL_OK")
</pallas_src>

<mosaic_0001>
module attributes {stable_mosaic.version = 11 : i64} {
  func.func @kernel(%arg0: i32, %arg1: memref<1x4x16x16xf32, #tpu.memory_space<vmem>>, %arg2: memref<8x36xf32, #tpu.memory_space<vmem>>, %arg3: memref<1x8x256xf32, #tpu.memory_space<vmem>>, %arg4: memref<8x2xf32, #tpu.memory_space<vmem>>) attributes {dimension_semantics = [#tpu.dimension_semantics<arbitrary>], iteration_bounds = array<i64: 2>, scalar_prefetch = 0 : i64, scratch_operands = 0 : i64, tpu.core_type = #tpu.core_type<tc>, window_params = [{transform_indices = @transform_0, window_bounds = array<i64: 1, 4, 16, 16>}, {pipeline_mode = #tpu.pipeline_mode<synchronous>, transform_indices = @transform_1, window_bounds = array<i64: 8, 36>}, {transform_indices = @transform_2, window_bounds = array<i64: 1, 8, 256>}, {pipeline_mode = #tpu.pipeline_mode<synchronous>, transform_indices = @transform_3, window_bounds = array<i64: 8, 2>}]} {
    %c0 = arith.constant 0 : index
    %c0_0 = arith.constant 0 : index
    %c0_1 = arith.constant 0 : index
    %c0_2 = arith.constant 0 : index
    %0 = vector.load %arg1[%c0, %c0_0, %c0_1, %c0_2] : memref<1x4x16x16xf32, #tpu.memory_space<vmem>>, vector<1x4x16x16xf32>
    %1 = vector.shape_cast %0 : vector<1x4x16x16xf32> to vector<4x16x16xf32>
    %cst = arith.constant 0.000000e+00 : f32
    %2 = vector.broadcast %cst : f32 to vector<4x16x1xf32>
    %3 = tpu.concatenate %2, %1, %2 in 2 : vector<4x16x1xf32>, vector<4x16x16xf32>, vector<4x16x1xf32> -> vector<4x16x18xf32>
    %cst_3 = arith.constant 0.000000e+00 : f32
    %4 = vector.broadcast %cst_3 : f32 to vector<4x1x18xf32>
    %5 = tpu.concatenate %4, %3, %4 in 1 : vector<4x1x18xf32>, vector<4x16x18xf32>, vector<4x1x18xf32> -> vector<4x18x18xf32>
    %6 = vector.extract_strided_slice %5 {offsets = [0, 0, 0], sizes = [4, 16, 16], strides = [1, 1, 1]} : vector<4x18x18xf32> to vector<4x16x16xf32>
    %7 = vector.extract_strided_slice %5 {offsets = [0, 0, 1], sizes = [4, 16, 16], strides = [1, 1, 1]} : vector<4x18x18xf32> to vector<4x16x16xf32>
    %8 = vector.extract_strided_slice %5 {offsets = [0, 0, 2], sizes = [4, 16, 16], strides = [1, 1, 1]} : vector<4x18x18xf32> to vector<4x16x16xf32>
    %9 = vector.extract_strided_slice %5 {offsets = [0, 1, 0], sizes = [4, 16, 16], strides = [1, 1, 1]} : vector<4x18x18xf32> to vector<4x16x16xf32>
    %10 = vector.extract_strided_slice %5 {offsets = [0, 1, 1], sizes = [4, 16, 16], strides = [1, 1, 1]} : vector<4x18x18xf32> to vector<4x16x16xf32>
    %11 = vector.extract_strided_slice %5 {offsets = [0, 1, 2], sizes = [4, 16, 16], strides = [1, 1, 1]} : vector<4x18x18xf32> to vector<4x16x16xf32>
    %12 = vector.extract_strided_slice %5 {offsets = [0, 2, 0], sizes = [4, 16, 16], strides = [1, 1, 1]} : vector<4x18x18xf32> to vector<4x16x16xf32>
    %13 = vector.extract_strided_slice %5 {offsets = [0, 2, 1], sizes = [4, 16, 16], strides = [1, 1, 1]} : vector<4x18x18xf32> to vector<4x16x16xf32>
    %14 = vector.extract_strided_slice %5 {offsets = [0, 2, 2], sizes = [4, 16, 16], strides = [1, 1, 1]} : vector<4x18x18xf32> to vector<4x16x16xf32>
    %15 = tpu.concatenate %6, %7, %8, %9, %10, %11, %12, %13, %14 in 0 : vector<4x16x16xf32>, vector<4x16x16xf32>, vector<4x16x16xf32>, vector<4x16x16xf32>, vector<4x16x16xf32>, vector<4x16x16xf32>, vector<4x16x16xf32>, vector<4x16x16xf32>, vector<4x16x16xf32> -> vector<36x16x16xf32>
    %16 = vector.shape_cast %15 : vector<36x16x16xf32> to vector<36x256xf32>
    %c0_4 = arith.constant 0 : index
    %c0_5 = arith.constant 0 : index
    %17 = vector.load %arg2[%c0_4, %c0_5] : memref<8x36xf32, #tpu.memory_space<vmem>>, vector<8x36xf32>
    %cst_6 = arith.constant dense<0.000000e+00> : vector<8x256xf32>
    %18 = tpu.matmul %17, %16, %cst_6 {dimension_numbers = #tpu.dot_dimension_numbers<[1], [0], [0], [1], [0, 0, 1, 1], [], []>} : vector<8x36xf32>, vector<36x256xf32>, vector<8x256xf32> -> vector<8x256xf32>
    %c0_7 = arith.constant 0 : index
    %c0_8 = arith.constant 0 : index
    %c0_9 = arith.constant 0 : index
    %19 = vector.load %arg3[%c0_7, %c0_8, %c0_9] : memref<1x8x256xf32, #tpu.memory_space<vmem>>, vector<1x8x256xf32>
    %20 = vector.shape_cast %19 : vector<1x8x256xf32> to vector<8x256xf32>
    %21 = vector.shape_cast %18 : vector<8x256xf32> to vector<1x8x256xf32>
    tpu.vector_store %arg3[%c0_7, %c0_8, %c0_9], %21 {strides = array<i32>} : memref<1x8x256xf32, #tpu.memory_space<vmem>>, vector<1x8x256xf32>,
    %c0_i32 = arith.constant 0 : i32
    %22 = arith.cmpi eq, %arg0, %c0_i32 : i32
    %23 = arith.extui %22 : i1 to i32
    %c0_i32_10 = arith.constant 0 : i32
    %24 = arith.cmpi ne, %23, %c0_i32_10 : i32
    scf.if %24 {
      %cst_17 = arith.constant 0.000000e+00 : f32
      %34 = vector.broadcast %cst_17 : f32 to vector<8x2xf32>
      %c0_18 = arith.constant 0 : index
      %c0_19 = arith.constant 0 : index
      %35 = vector.load %arg4[%c0_18, %c0_19] : memref<8x2xf32, #tpu.memory_space<vmem>>, vector<8x2xf32>
      tpu.vector_store %arg4[%c0_18, %c0_19], %34 {strides = array<i32>} : memref<8x2xf32, #tpu.memory_space<vmem>>, vector<8x2xf32>,
    } else {
    }
    %cst_11 = arith.constant dense<0.000000e+00> : vector<8xf32>
    %25 = vector.multi_reduction <add>, %18, %cst_11 [1] : vector<8x256xf32> to vector<8xf32>
    %26 = vector.shape_cast %25 : vector<8xf32> to vector<8x1xf32>
    %27 = arith.mulf %18, %18 : vector<8x256xf32>
    %cst_12 = arith.constant dense<0.000000e+00> : vector<8xf32>
    %28 = vector.multi_reduction <add>, %27, %cst_12 [1] : vector<8x256xf32> to vector<8xf32>
    %29 = vector.shape_cast %28 : vector<8xf32> to vector<8x1xf32>
    %c0_13 = arith.constant 0 : index
    %c0_14 = arith.constant 0 : index
    %30 = vector.load %arg4[%c0_13, %c0_14] : memref<8x2xf32, #tpu.memory_space<vmem>>, vector<8x2xf32>
    %31 = tpu.concatenate %26, %29 in 1 : vector<8x1xf32>, vector<8x1xf32> -> vector<8x2xf32>
    %32 = arith.addf %30, %31 : vector<8x2xf32>
    %c0_15 = arith.constant 0 : index
    %c0_16 = arith.constant 0 : index
    %33 = vector.load %arg4[%c0_15, %c0_16] : memref<8x2xf32, #tpu.memory_space<vmem>>, vector<8x2xf32>
    tpu.vector_store %arg4[%c0_15, %c0_16], %32 {strides = array<i32>} : memref<8x2xf32, #tpu.memory_space<vmem>>, vector<8x2xf32>,
    return
  }
  func.func @transform_0(%arg0: i32) -> (i32, i32, i32, i32) {
    %c0_i32 = arith.constant 0 : i32
    %c0_i32_0 = arith.constant 0 : i32
    %c0_i32_1 = arith.constant 0 : i32
    %c0_i32_2 = arith.constant 0 : i32
    return %arg0, %c0_i32, %c0_i32_0, %c0_i32_1 : i32, i32, i32, i32
  }
  func.func @transform_1(%arg0: i32) -> (i32, i32) {
    %c0_i32 = arith.constant 0 : i32
    %c0_i32_0 = arith.constant 0 : i32
    %c0_i32_1 = arith.constant 0 : i32
    return %c0_i32, %c0_i32_0 : i32, i32
  }
  func.func @transform_2(%arg0: i32) -> (i32, i32, i32) {
    %c0_i32 = arith.constant 0 : i32
    %c0_i32_0 = arith.constant 0 : i32
    %c0_i32_1 = arith.constant 0 : i32
    return %arg0, %c0_i32, %c0_i32_0 : i32, i32, i32
  }
  func.func @transform_3(%arg0: i32) -> (i32, i32) {
    %c0_i32 = arith.constant 0 : i32
    %c0_i32_0 = arith.constant 0 : i32
    %c0_i32_1 = arith.constant 0 : i32
    return %c0_i32, %c0_i32_0 : i32, i32
  }
}

module attributes {stable_mosaic.version = 11 : i64} {
  func.func @_bn_lrelu_kernel(%arg0: i32, %arg1: i32, %arg2: memref<1x8x256xf32, #tpu.memory_space<vmem>>, %arg3: memref<8x1xf32, #tpu.memory_space<vmem>>, %arg4: memref<8x1xf32, #tpu.memory_space<vmem>>, %arg5: memref<1x8x256xf32, #tpu.memory_space<vmem>>) attributes {dimension_semantics = [#tpu.dimension_semantics<parallel>, #tpu.dimension_semantics<parallel>], iteration_bounds = array<i64: 2, 1>, scalar_prefetch = 0 : i64, scratch_operands = 0 : i64, tpu.core_type = #tpu.core_type<tc>, window_params = [{transform_indices = @transform_0, window_bounds = array<i64: 1, 8, 256>}, {pipeline_mode = #tpu.pipeline_mode<synchronous>, transform_indices = @transform_1, window_bounds = array<i64: 8, 1>}, {pipeline_mode = #tpu.pipeline_mode<synchronous>, transform_indices = @transform_2, window_bounds = array<i64: 8, 1>}, {transform_indices = @transform_3, window_bounds = array<i64: 1, 8, 256>}]} {
    %c0 = arith.constant 0 : index
    %c0_0 = arith.constant 0 : index
    %c0_1 = arith.constant 0 : index
    %0 = vector.load %arg2[%c0, %c0_0, %c0_1] : memref<1x8x256xf32, #tpu.memory_space<vmem>>, vector<1x8x256xf32>
    %1 = vector.shape_cast %0 : vector<1x8x256xf32> to vector<8x256xf32>
    %c0_2 = arith.constant 0 : index
    %c0_3 = arith.constant 0 : index
    %2 = vector.load %arg3[%c0_2, %c0_3] : memref<8x1xf32, #tpu.memory_space<vmem>>, vector<8x1xf32>
    %3 = vector.broadcast %2 : vector<8x1xf32> to vector<8x256xf32>
    %4 = arith.mulf %1, %3 : vector<8x256xf32>
    %c0_4 = arith.constant 0 : index
    %c0_5 = arith.constant 0 : index
    %5 = vector.load %arg4[%c0_4, %c0_5] : memref<8x1xf32, #tpu.memory_space<vmem>>, vector<8x1xf32>
    %6 = vector.broadcast %5 : vector<8x1xf32> to vector<8x256xf32>
    %7 = arith.addf %4, %6 : vector<8x256xf32>
    %cst = arith.constant 0.000000e+00 : f32
    %8 = vector.broadcast %cst : f32 to vector<8x256xf32>
    %9 = arith.cmpf oge, %7, %8 : vector<8x256xf32>
    %cst_6 = arith.constant 2.000000e-01 : f32
    %10 = vector.broadcast %cst_6 : f32 to vector<8x256xf32>
    %11 = arith.mulf %10, %7 : vector<8x256xf32>
    %12 = arith.select %9, %7, %11 : vector<8x256xi1>, vector<8x256xf32>
    %c0_7 = arith.constant 0 : index
    %c0_8 = arith.constant 0 : index
    %c0_9 = arith.constant 0 : index
    %13 = vector.load %arg5[%c0_7, %c0_8, %c0_9] : memref<1x8x256xf32, #tpu.memory_space<vmem>>, vector<1x8x256xf32>
    %14 = vector.shape_cast %13 : vector<1x8x256xf32> to vector<8x256xf32>
    %15 = vector.shape_cast %12 : vector<8x256xf32> to vector<1x8x256xf32>
    tpu.vector_store %arg5[%c0_7, %c0_8, %c0_9], %15 {strides = array<i32>} : memref<1x8x256xf32, #tpu.memory_space<vmem>>, vector<1x8x256xf32>,
    return
  }
  func.func @transform_0(%arg0: i32, %arg1: i32) -> (i32, i32, i32) {
    %c0_i32 = arith.constant 0 : i32
    %c0_i32_0 = arith.constant 0 : i32
    return %arg0, %c0_i32, %arg1 : i32, i32, i32
  }
  func.func @transform_1(%arg0: i32, %arg1: i32) -> (i32, i32) {
    %c0_i32 = arith.constant 0 : i32
    %c0_i32_0 = arith.constant 0 : i32
    %c0_i32_1 = arith.constant 0 : i32
    return %c0_i32, %c0_i32_0 : i32, i32
  }
  func.func @transform_2(%arg0: i32, %arg1: i32) -> (i32, i32) {
    %c0_i32 = arith.constant 0 : i32
    %c0_i32_0 = arith.constant 0 : i32
    %c0_i32_1 = arith.constant 0 : i32
    return %c0_i32, %c0_i32_0 : i32, i32
  }
  func.func @transform_3(%arg0: i32, %arg1: i32) -> (i32, i32, i32) {
    %c0_i32 = arith.constant 0 : i32
    %c0_i32_0 = arith.constant 0 : i32
    return %arg0, %c0_i32, %arg1 : i32, i32, i32
  }
}

</mosaic_0001>

<llo_original>
// kernel: conv_bn_relu.3
$region0: #{conv_bn_relu.3}
  #allocation0 [shape = 'u32[]', space=smem, size = 0x4, offset = 0x4, fixed_abs, tag = 'smem constant byte address 0x4 - core index']
  #allocation1 [shape = 'u32[144,128]{1,0:T(1,128)}', space=vmem, size = 0x12000, scoped, tag = 'internal scratch']
  %s0 = inlined_call_operand.vmem [shape: f32[2,8,256], index: 0, kind: input, shape index: {}]
  %s1 = inlined_call_operand.vmem [shape: f32[8,1], index: 1, kind: input, shape index: {}]
  %s2 = inlined_call_operand.vmem [shape: f32[8,1], index: 2, kind: input, shape index: {}]
  %s3 = inlined_call_operand.vmem [shape: f32[2,8,256], index: 3, kind: output, shape index: {}]
  %s4 = sld [smem:[#allocation0]]
  $region45: #{conv_bn_relu.3} parent=0
    _
  %s6 = ssub.s32 1, %s4
  %s7 = scalar_select 0, %s6, %s4
  loop: start=0, step=1, limit=4
  $region2: #{conv_bn_relu.3} parent=0 // loop_pre_header
    _
  $region3: #{conv_bn_relu.3} parent=0 // loop_header
    %s9 = sphi 0, %s13
    %p10 = scmp.ge.s32.totalorder %s9, 4
    %s16 = sphi 0, %s28
    %s17 = sphi 0, %s24
    %s18 = sphi 0, %s16
    %s19 = sphi 0, %s17
    %s20 = sphi 0, %s18
    %s21 = sphi 0, %s19
    %s33 = sphi 0, %s35
    %s36 = sphi 0, %s33
    %s37 = sphi 0, %s36
    %s53 = sphi 0, %s37
    %s57 = sphi 0, %s57
    %s59 = sphi 0, %s57
    %s60 = sphi 0, %s59
    %s74 = sphi 0, %s60
    %s78 = sphi 0, %s78
    %s80 = sphi 0, %s78
    %s81 = sphi 0, %s80
    %s95 = sphi 0, %s81
    %s103 = sphi 0, %s105
    %s106 = sphi 0, %s103
    %s107 = sphi 0, %s106
    %s123 = sphi 0, %s107
  $region4: #{conv_bn_relu.3} parent=0 // loop_header_branch
    %12 = sbr.rel (%p10) target = $region8
  $region5: #{conv_bn_relu.3} parent=0 // loop_body
    %s14 = ssub.s32 %s9, 1
    %s15 = ssub.s32 %s9, 2
    %s22 = sadd.s32 1, %s17
    %p23 = scmp.ge.s32.totalorder %s22, 1
    %s24 = scalar_select %p23, 0, %s22
    %s25 = sadd.s32 1, %s16
    %s26 = scalar_select %p23, %s25, %s16
    %p27 = scmp.ge.s32.totalorder %s26, 2
    %s28 = scalar_select %p27, 0, %s26
    %s29 = ssub.s32 %s16, %s28
    %s30 = ssub.s32 %s17, %s24
    %s31 = sor.u32 %s29, %s30
    %p32 = scmp.eq.s32.totalorder %s31, 0
    %s34 = sadd.s32 %s33, 1
    %s35 = scalar_select %p32, %s33, %s34
    %p38 = pneg %p32
    %p39 = scmp.eq.s32.totalorder %s9, 1
    %p40 = por %p38, %p39
    %p41 = scmp.ne.s32.totalorder %s33, %s36
    %p42 = scmp.eq.s32.totalorder %s9, 0
    %p43 = por %p41, %p42
    %p44 = scmp.ne.s32.totalorder %s33, %s36
    %p45 = scmp.eq.s32.totalorder %s14, 1
    %p46 = por %p44, %p45
    %p47 = scmp.ne.s32.totalorder %s36, %s37
    %p48 = scmp.eq.s32.totalorder %s14, 0
    %p49 = por %p47, %p48
    %p50 = scmp.ne.s32.totalorder %s36, %s37
    %p51 = scmp.eq.s32.totalorder %s15, 1
    %p52 = por %p50, %p51
    %p54 = scmp.ne.s32.totalorder %s37, %s53
    %p55 = scmp.eq.s32.totalorder %s15, 0
    %p56 = por %p54, %p55
    %s58 = sadd.s32 %s57, 1
    %p61 = scmp.eq.s32.totalorder %s9, 1
    %p62 = scmp.ne.s32.totalorder %s57, %s59
    %p63 = scmp.eq.s32.totalorder %s9, 0
    %p64 = por %p62, %p63
    %p65 = scmp.ne.s32.totalorder %s57, %s59
    %p66 = scmp.eq.s32.totalorder %s14, 1
    %p67 = por %p65, %p66
    %p68 = scmp.ne.s32.totalorder %s59, %s60
    %p69 = scmp.eq.s32.totalorder %s14, 0
    %p70 = por %p68, %p69
    %p71 = scmp.ne.s32.totalorder %s59, %s60
    %p72 = scmp.eq.s32.totalorder %s15, 1
    %p73 = por %p71, %p72
    %p75 = scmp.ne.s32.totalorder %s60, %s74
    %p76 = scmp.eq.s32.totalorder %s15, 0
    %p77 = por %p75, %p76
    %s79 = sadd.s32 %s78, 1
    %p82 = scmp.eq.s32.totalorder %s9, 1
    %p83 = scmp.ne.s32.totalorder %s78, %s80
    %p84 = scmp.eq.s32.totalorder %s9, 0
    %p85 = por %p83, %p84
    %p86 = scmp.ne.s32.totalorder %s78, %s80
    %p87 = scmp.eq.s32.totalorder %s14, 1
    %p88 = por %p86, %p87
    %p89 = scmp.ne.s32.totalorder %s80, %s81
    %p90 = scmp.eq.s32.totalorder %s14, 0
    %p91 = por %p89, %p90
    %p92 = scmp.ne.s32.totalorder %s80, %s81
    %p93 = scmp.eq.s32.totalorder %s15, 1
    %p94 = por %p92, %p93
    %p96 = scmp.ne.s32.totalorder %s81, %s95
    %p97 = scmp.eq.s32.totalorder %s15, 0
    %p98 = por %p96, %p97
    %s99 = ssub.s32 %s16, %s28
    %s100 = ssub.s32 %s17, %s24
    %s101 = sor.u32 %s99, %s100
    %p102 = scmp.eq.s32.totalorder %s101, 0
    %s104 = sadd.s32 %s103, 1
    %s105 = scalar_select %p102, %s103, %s104
    %p108 = pneg %p102
    %p109 = scmp.eq.s32.totalorder %s9, 1
    %p110 = por %p108, %p109
    %p111 = scmp.ne.s32.totalorder %s103, %s106
    %p112 = scmp.eq.s32.totalorder %s9, 0
    %p113 = por %p111, %p112
    %p114 = scmp.ne.s32.totalorder %s103, %s106
    %p115 = scmp.eq.s32.totalorder %s14, 1
    %p116 = por %p114, %p115
    %p117 = scmp.ne.s32.totalorder %s106, %s107
    %p118 = scmp.eq.s32.totalorder %s14, 0
    %p119 = por %p117, %p118
    %p120 = scmp.ne.s32.totalorder %s106, %s107
    %p121 = scmp.eq.s32.totalorder %s15, 1
    %p122 = por %p120, %p121
    %p124 = scmp.ne.s32.totalorder %s107, %s123
    %p125 = scmp.eq.s32.totalorder %s15, 0
    %p126 = por %p124, %p125
    %p127 = scmp.le.s32.totalorder 1, %s9
    %p128 = scmp.lt.s32.totalorder %s9, 3
    %p129 = pnand %p127, %p128
    %p130 = pneg %p129
    // Predicated region
    $region9: #{conv_bn_relu.3} parent=5 // pred_check
      _
    $region10: #{conv_bn_relu.3} parent=5 // pred_check_branch
      %132 = sbr.rel (%p129) target = $region12
    $region11: #{conv_bn_relu.3} parent=5 // pred_region
      %s133 = ssub.s32 %s9, 1
      // Predicated region
      $region13: #{conv_bn_relu.3} parent=11 // pred_check
        %p134 = pneg %p70
      $region14: #{conv_bn_relu.3} parent=11 // pred_check_branch
        %136 = sbr.rel (%p134) target = $region16
      $region15: #{conv_bn_relu.3} parent=11 // pred_region
        _
      $region16: #{conv_bn_relu.3} parent=11 // pred_fallthru
        _
      // Predicated region
      $region17: #{conv_bn_relu.3} parent=11 // pred_check
        %p137 = pneg %p91
      $region18: #{conv_bn_relu.3} parent=11 // pred_check_branch
        %139 = sbr.rel (%p137) target = $region20
      $region19: #{conv_bn_relu.3} parent=11 // pred_region
        _
      $region20: #{conv_bn_relu.3} parent=11 // pred_fallthru
        _
    $region12: #{conv_bn_relu.3} parent=5 // pred_fallthru
      _
    %p140 = scmp.lt.s32.totalorder %s9, 2
    // Predicated region
    $region21: #{conv_bn_relu.3} parent=5 // pred_check
      %p141 = pneg %p140
    $region22: #{conv_bn_relu.3} parent=5 // pred_check_branch
      %143 = sbr.rel (%p141) target = $region24
    $region23: #{conv_bn_relu.3} parent=5 // pred_region
      // Predicated region
      $region25: #{conv_bn_relu.3} parent=23 // pred_check
        %p144 = pneg %p43
      $region26: #{conv_bn_relu.3} parent=23 // pred_check_branch
        %146 = sbr.rel (%p144) target = $region28
      $region27: #{conv_bn_relu.3} parent=23 // pred_region
        %s147 = smul.u32 2, %s17
        %p148 = scmp.lt.s32.totalorder %s16, 1
        %s149 = scalar_select %p148, %s16, 1
        %p150 = scmp.lt.s32.totalorder %s147, 1
        %s151 = scalar_select %p150, %s147, 1
        %s152 = smul.addr %s149, 2
        %s153 = sadd.s32 %s151, %s152
        %s154 = smul.addr %s153, 8
        %s155 = scalar_lea.vmem %s0, %s154
        %s156 = smul.u32 2, %s17
      $region28: #{conv_bn_relu.3} parent=23 // pred_fallthru
        _
    $region24: #{conv_bn_relu.3} parent=5 // pred_fallthru
      _
    %p157 = scmp.le.s32.totalorder 1, %s9
    %p158 = scmp.lt.s32.totalorder %s9, 3
    %p159 = pnand %p157, %p158
    %p160 = pneg %p159
    // Predicated region
    $region29: #{conv_bn_relu.3} parent=5 // pred_check
      _
    $region30: #{conv_bn_relu.3} parent=5 // pred_check_branch
      %162 = sbr.rel (%p159) target = $region32
    $region31: #{conv_bn_relu.3} parent=5 // pred_region
      %s163 = ssub.s32 %s9, 1
      %s164 = smul.u32 2, %s19
      %p165 = scmp.lt.s32.totalorder %s18, 1
      %s166 = scalar_select %p165, %s18, 1
      %p167 = scmp.lt.s32.totalorder %s164, 1
      %s168 = scalar_select %p167, %s164, 1
      %s169 = smul.addr %s166, 2
      %s170 = sadd.s32 %s168, %s169
      %s171 = smul.addr %s170, 8
      %s172 = scalar_lea.vmem %s0, %s171
      %p173 = pneg %p49
      %p174 = pneg %p46
      %p175 = pneg %p70
      %p176 = pneg %p67
      %p177 = pneg %p91
      %p178 = pneg %p88
      %p179 = pneg %p119
      %p180 = pneg %p116
      %s181 = smul.u32 2, %s19
      %p182 = scmp.lt.s32.totalorder %s18, 1
      %s183 = scalar_select %p182, %s18, 1
      %p184 = scmp.lt.s32.totalorder %s181, 1
      %s185 = scalar_select %p184, %s181, 1
      %s186 = smul.addr %s183, 2
      %s187 = sadd.s32 %s185, %s186
      %s188 = smul.addr %s187, 8
      %s189 = scalar_lea.vmem %s3, %s188
      %s190 = smul.u32 2, %s19
      %p191 = scmp.lt.s32.totalorder %s18, 1
      %s192 = scalar_select %p191, %s18, 1
      %p193 = scmp.lt.s32.totalorder %s190, 1
      %s194 = scalar_select %p193, %s190, 1
      %s195 = smul.addr %s192, 2
      %s196 = sadd.s32 %s194, %s195
      %s197 = smul.addr %s196, 8
      %s198 = scalar_lea.vmem %s0, %s197
      %s199 = smul.u32 2, %s19
      %s200 = smul.u32 2, %s19
      %p201 = scmp.lt.s32.totalorder %s18, 1
      %s202 = scalar_select %p201, %s18, 1
      %p203 = scmp.lt.s32.totalorder %s200, 1
      %s204 = scalar_select %p203, %s200, 1
      %s205 = smul.addr %s202, 2
      %s206 = sadd.s32 %s204, %s205
      %s207 = smul.addr %s206, 8
      %s208 = scalar_lea.vmem %s3, %s207
      %s209 = smul.u32 2, %s19
      %v210 = vld [vmem:[%s198] sm:$0xff]
      %v211 = vld [vmem:[%s198 + $0x8] sm:$0xff]
      %v212 = vld [vmem:[%s1] sm:$0xff]
      %214 = vset.pattern.permute.xlu0 0
      %215 = vperm.xlu0 %214, %v212
      %v216 = vpop.permute.xlu0 %215
      %v218 = vmul.f32 %v210, %v216
      %v219 = vmul.f32 %v211, %v216
      %v220 = vld [vmem:[%s2] sm:$0xff]
      %222 = vset.pattern.permute.xlu0 0
      %223 = vperm.xlu0 %222, %v220
      %v224 = vpop.permute.xlu0 %223
      %v226 = vadd.f32 %v218, %v224
      %v227 = vadd.f32 %v219, %v224
      %vm228 = vcmp.ge.f32.partialorder %v226, 0.0
      %vm229 = vcmp.ge.f32.partialorder %v227, 0.0
      %v230 = vmul.f32 %v226, 0.2
      %v231 = vmul.f32 %v227, 0.2
      %v232 = vsel %vm228, %v226, %v230
      %v233 = vsel %vm229, %v227, %v231
      %234 = vst [vmem:[%s208] sm:$0xff] %v232
      %235 = vst [vmem:[%s208 + $0x8] sm:$0xff] %v233
      %s236 = smul.u32 2, %s19
      %p237 = scmp.lt.s32.totalorder %s18, 1
      %s238 = scalar_select %p237, %s18, 1
      %p239 = scmp.lt.s32.totalorder %s236, 1
      %s240 = scalar_select %p239, %s236, 1
      %s241 = smul.addr %s238, 2
      %s242 = sadd.s32 %s240, %s241
      %s243 = smul.addr %s242, 8
      %s244 = scalar_lea.vmem %s3, %s243
      // Predicated region
      $region33: #{conv_bn_relu.3} parent=31 // pred_check
        %p245 = pneg %p116
      $region34: #{conv_bn_relu.3} parent=31 // pred_check_branch
        %247 = sbr.rel (%p245) target = $region36
      $region35: #{conv_bn_relu.3} parent=31 // pred_region
        %s248 = smul.u32 2, %s19
      $region36: #{conv_bn_relu.3} parent=31 // pred_fallthru
        _
    $region32: #{conv_bn_relu.3} parent=5 // pred_fallthru
      _
    %p249 = scmp.le.s32.totalorder 2, %s9
    // Predicated region
    $region37: #{conv_bn_relu.3} parent=5 // pred_check
      %p250 = pneg %p249
    $region38: #{conv_bn_relu.3} parent=5 // pred_check_branch
      %252 = sbr.rel (%p250) target = $region40
    $region39: #{conv_bn_relu.3} parent=5 // pred_region
      %s253 = ssub.s32 %s9, 2
      // Predicated region
      $region41: #{conv_bn_relu.3} parent=39 // pred_check
        %p254 = pneg %p122
      $region42: #{conv_bn_relu.3} parent=39 // pred_check_branch
        %256 = sbr.rel (%p254) target = $region44
      $region43: #{conv_bn_relu.3} parent=39 // pred_region
        %s257 = smul.u32 2, %s21
        %p258 = scmp.lt.s32.totalorder %s20, 1
        %s259 = scalar_select %p258, %s20, 1
        %p260 = scmp.lt.s32.totalorder %s257, 1
        %s261 = scalar_select %p260, %s257, 1
        %s262 = smul.addr %s259, 2
        %s263 = sadd.s32 %s261, %s262
        %s264 = smul.addr %s263, 8
        %s265 = scalar_lea.vmem %s3, %s264
      $region44: #{conv_bn_relu.3} parent=39 // pred_fallthru
        _
    $region40: #{conv_bn_relu.3} parent=5 // pred_fallthru
      _
  $region6: #{conv_bn_relu.3} parent=0 // loop_footer
    %s13 = sadd.s32 1, %s9
  $region7: #{conv_bn_relu.3} parent=0 // loop_footer_branch
    %8 = sbr.rel target = $region3
  $region8: #{conv_bn_relu.3} parent=0 // loop_exit
    _

// kernel: conv_bn_relu.2
$region0: #{conv_bn_relu.2}
  #allocation0 [shape = 'u32[]', space=smem, size = 0x4, offset = 0x4, fixed_abs, tag = 'smem constant byte address 0x4 - core index']
  #allocation1 [shape = 'u32[144,128]{1,0:T(1,128)}', space=vmem, size = 0x12000, scoped, tag = 'internal scratch']
  %s0 = inlined_call_operand.hbm [shape: f32[2,4,16,16], index: 0, kind: input, shape index: {}]
  %s1 = inlined_call_operand.vmem [shape: f32[8,36], index: 1, kind: input, shape index: {}]
  %s2 = inlined_call_operand.vmem [shape: f32[2,8,256], index: 2, kind: output, shape index: {0}]
  %s3 = inlined_call_operand.vmem [shape: f32[8,2], index: 3, kind: output, shape index: {1}]
  %4 = xla_tuple %s2, %s3
  %s5 = sld [smem:[#allocation0]]
  $region57: #{conv_bn_relu.2} parent=0
    _
  %s7 = ssub.s32 1, %s5
  %s8 = scalar_select 0, %s7, %s5
  $region1: #{conv_bn_relu.2} parent=0
    #allocation2 [shape = 'u8[65536]{0}', space=vmem, size = 0x10000, scoped, tag = 'input window, operand 0']
    #allocation3 [shape = 's32[2]{0}', space=sflag, size = 0x8, scoped, tag = 'scoped memory for conv_bn_relu.2']
    %9 = vsyncpa [#allocation3], 0
    %s10 = scalar_lea.sflag [#allocation3], 1
    %11 = vsyncpa %s10, 0
    loop: start=0, step=1, limit=4
    $region2: #{conv_bn_relu.2} parent=1 // loop_pre_header
      _
    $region3: #{conv_bn_relu.2} parent=1 // loop_header
      %s13 = sphi 0, %s17
      %p14 = scmp.ge.s32.totalorder %s13, 4
      %s23 = sphi 0, %s25
      %s26 = sphi 0, %s23
      %s27 = sphi 0, %s26
      %s43 = sphi 0, %s27
      %s47 = sphi 0, %s47
      %s49 = sphi 0, %s47
      %s50 = sphi 0, %s49
      %s64 = sphi 0, %s50
      %s70 = sphi 0, %s72
      %s73 = sphi 0, %s70
      %s74 = sphi 0, %s73
      %s90 = sphi 0, %s74
      %s94 = sphi 0, %s94
      %s96 = sphi 0, %s94
      %s97 = sphi 0, %s96
      %s111 = sphi 0, %s97
    $region4: #{conv_bn_relu.2} parent=1 // loop_header_branch
      %16 = sbr.rel (%p14) target = $region8
    $region5: #{conv_bn_relu.2} parent=1 // loop_body
      %s18 = ssub.s32 %s13, 1
      %s19 = ssub.s32 %s13, 2
      %s20 = sadd.s32 %s13, 1
      %s21 = ssub.s32 %s13, %s20
      %p22 = scmp.eq.s32.totalorder %s21, 0
      %s24 = sadd.s32 %s23, 1
      %s25 = scalar_select %p22, %s23, %s24
      %p28 = pneg %p22
      %p29 = scmp.eq.s32.totalorder %s13, 1
      %p30 = por %p28, %p29
      %p31 = scmp.ne.s32.totalorder %s23, %s26
      %p32 = scmp.eq.s32.totalorder %s13, 0
      %p33 = por %p31, %p32
      %p34 = scmp.ne.s32.totalorder %s23, %s26
      %p35 = scmp.eq.s32.totalorder %s18, 1
      %p36 = por %p34, %p35
      %p37 = scmp.ne.s32.totalorder %s26, %s27
      %p38 = scmp.eq.s32.totalorder %s18, 0
      %p39 = por %p37, %p38
      %p40 = scmp.ne.s32.totalorder %s26, %s27
      %p41 = scmp.eq.s32.totalorder %s19, 1
      %p42 = por %p40, %p41
      %p44 = scmp.ne.s32.totalorder %s27, %s43
      %p45 = scmp.eq.s32.totalorder %s19, 0
      %p46 = por %p44, %p45
      %s48 = sadd.s32 %s47, 1
      %p51 = scmp.eq.s32.totalorder %s13, 1
      %p52 = scmp.ne.s32.totalorder %s47, %s49
      %p53 = scmp.eq.s32.totalorder %s13, 0
      %p54 = por %p52, %p53
      %p55 = scmp.ne.s32.totalorder %s47, %s49
      %p56 = scmp.eq.s32.totalorder %s18, 1
      %p57 = por %p55, %p56
      %p58 = scmp.ne.s32.totalorder %s49, %s50
      %p59 = scmp.eq.s32.totalorder %s18, 0
      %p60 = por %p58, %p59
      %p61 = scmp.ne.s32.totalorder %s49, %s50
      %p62 = scmp.eq.s32.totalorder %s19, 1
      %p63 = por %p61, %p62
      %p65 = scmp.ne.s32.totalorder %s50, %s64
      %p66 = scmp.eq.s32.totalorder %s19, 0
      %p67 = por %p65, %p66
      %s68 = ssub.s32 %s13, %s20
      %p69 = scmp.eq.s32.totalorder %s68, 0
      %s71 = sadd.s32 %s70, 1
      %s72 = scalar_select %p69, %s70, %s71
      %p75 = pneg %p69
      %p76 = scmp.eq.s32.totalorder %s13, 1
      %p77 = por %p75, %p76
      %p78 = scmp.ne.s32.totalorder %s70, %s73
      %p79 = scmp.eq.s32.totalorder %s13, 0
      %p80 = por %p78, %p79
      %p81 = scmp.ne.s32.totalorder %s70, %s73
      %p82 = scmp.eq.s32.totalorder %s18, 1
      %p83 = por %p81, %p82
      %p84 = scmp.ne.s32.totalorder %s73, %s74
      %p85 = scmp.eq.s32.totalorder %s18, 0
      %p86 = por %p84, %p85
      %p87 = scmp.ne.s32.totalorder %s73, %s74
      %p88 = scmp.eq.s32.totalorder %s19, 1
      %p89 = por %p87, %p88
      %p91 = scmp.ne.s32.totalorder %s74, %s90
      %p92 = scmp.eq.s32.totalorder %s19, 0
      %p93 = por %p91, %p92
      %s95 = sadd.s32 %s94, 1
      %p98 = scmp.eq.s32.totalorder %s13, 1
      %p99 = scmp.ne.s32.totalorder %s94, %s96
      %p100 = scmp.eq.s32.totalorder %s13, 0
      %p101 = por %p99, %p100
      %p102 = scmp.ne.s32.totalorder %s94, %s96
      %p103 = scmp.eq.s32.totalorder %s18, 1
      %p104 = por %p102, %p103
      %p105 = scmp.ne.s32.totalorder %s96, %s97
      %p106 = scmp.eq.s32.totalorder %s18, 0
      %p107 = por %p105, %p106
      %p108 = scmp.ne.s32.totalorder %s96, %s97
      %p109 = scmp.eq.s32.totalorder %s19, 1
      %p110 = por %p108, %p109
      %p112 = scmp.ne.s32.totalorder %s97, %s111
      %p113 = scmp.eq.s32.totalorder %s19, 0
      %p114 = por %p112, %p113
      %p115 = scmp.le.s32.totalorder 1, %s13
      %p116 = scmp.lt.s32.totalorder %s13, 3
      %p117 = pnand %p115, %p116
      %p118 = pneg %p117
      // Predicated region
      $region9: #{conv_bn_relu.2} parent=5 // pred_check
        _
      $region10: #{conv_bn_relu.2} parent=5 // pred_check_branch
        %120 = sbr.rel (%p117) target = $region12
      $region11: #{conv_bn_relu.2} parent=5 // pred_region
        %s121 = ssub.s32 %s13, 1
        // Predicated region
        $region13: #{conv_bn_relu.2} parent=11 // pred_check
          %p122 = pneg %p60
        $region14: #{conv_bn_relu.2} parent=11 // pred_check_branch
          %124 = sbr.rel (%p122) target = $region16
        $region15: #{conv_bn_relu.2} parent=11 // pred_region
          _
        $region16: #{conv_bn_relu.2} parent=11 // pred_fallthru
          _
      $region12: #{conv_bn_relu.2} parent=5 // pred_fallthru
        _
      %p125 = scmp.lt.s32.totalorder %s13, 2
      // Predicated region
      $region17: #{conv_bn_relu.2} parent=5 // pred_check
        %p126 = pneg %p125
      $region18: #{conv_bn_relu.2} parent=5 // pred_check_branch
        %128 = sbr.rel (%p126) target = $region20
      $region19: #{conv_bn_relu.2} parent=5 // pred_region
        // Predicated region
        $region21: #{conv_bn_relu.2} parent=19 // pred_check
          %p129 = pneg %p33
        $region22: #{conv_bn_relu.2} parent=19 // pred_check_branch
          %131 = sbr.rel (%p129) target = $region24
        $region23: #{conv_bn_relu.2} parent=19 // pred_region
          %s132 = sand.u32 %s23, 1
          %s133 = scalar_lea.sflag [#allocation3], %s132
          %s134 = sand.u32 %s23, 1
          %s135 = smul.addr %s134, 64
          %s136 = scalar_lea.vmem [#allocation2], %s135
          %s138 = ssub.s32 1024, 1024
          %139 = vsyncadd %s133, %s138
          %s140 = smul.addr %s13, 8
          %s141 = smul.addr %s140, 128
          %s142 = scalar_lea.hbm %s0, %s141
          %s143 = sshll.u32 %s136, 4
          %s144 = int_to_ptr.vmem [resolvable:$true] %s143
          %149 = dma.hbm_to_vmem [thread:$0]  %s142, 1024, %s144, %s133, 128, 128, 8
        $region24: #{conv_bn_relu.2} parent=19 // pred_fallthru
          _
      $region20: #{conv_bn_relu.2} parent=5 // pred_fallthru
        _
      %p150 = scmp.le.s32.totalorder 1, %s13
      %p151 = scmp.lt.s32.totalorder %s13, 3
      %p152 = pnand %p150, %p151
      %p153 = pneg %p152
      // Predicated region
      $region25: #{conv_bn_relu.2} parent=5 // pred_check
        _
      $region26: #{conv_bn_relu.2} parent=5 // pred_check_branch
        %155 = sbr.rel (%p152) target = $region28
      $region27: #{conv_bn_relu.2} parent=5 // pred_region
        %s156 = ssub.s32 %s13, 1
        %s157 = sand.u32 %s26, 1
        %s158 = scalar_lea.sflag [#allocation3], %s157
        %s159 = sand.u32 %s26, 1
        %s160 = smul.addr %s159, 64
        %s161 = scalar_lea.vmem [#allocation2], %s160
        // Predicated region
        $region29: #{conv_bn_relu.2} parent=27 // pred_check
          %p162 = pneg %p39
        $region30: #{conv_bn_relu.2} parent=27 // pred_check_branch
          %164 = sbr.rel (%p162) target = $region32
        $region31: #{conv_bn_relu.2} parent=27 // pred_region
          %165 = dma.done %s158, 1024
        $region32: #{conv_bn_relu.2} parent=27 // pred_fallthru
          _
        %s166 = sand.u32 %s26, 1
        %s167 = scalar_lea.sflag [#allocation3], %s166
        %s168 = sand.u32 %s26, 1
        %s169 = smul.addr %s168, 64
        %s170 = scalar_lea.vmem [#allocation2], %s169
        %p171 = pneg %p39
        %p172 = pneg %p36
        %p173 = pneg %p60
        %p174 = pneg %p57
        %p175 = pneg %p86
        %p176 = pneg %p83
        %p177 = scmp.lt.s32.totalorder %s18, 1
        %s178 = scalar_select %p177, %s18, 1
        %s179 = smul.addr %s178, 2
        %s180 = smul.addr %s179, 8
        %s181 = scalar_lea.vmem %s2, %s180
        %p182 = pneg %p107
        %p183 = pneg %p104
        %p184 = scmp.lt.s32.totalorder %s18, 1
        %s185 = scalar_select %p184, %s18, 1
        %s186 = smul.addr %s185, 2
        %s187 = smul.addr %s186, 8
        %s188 = scalar_lea.vmem %s2, %s187
        %v189 = vld [vmem:[%s161] sm:$0xff]
        %v190 = vld [vmem:[%s161 + $0x8] sm:$0xff]
        %v191 = vld [vmem:[%s161 + $0x10] sm:$0xff]
        %v192 = vld [vmem:[%s161 + $0x18] sm:$0xff]
        %v193 = vld [vmem:[%s161 + $0x20] sm:$0xff]
        %v194 = vld [vmem:[%s161 + $0x28] sm:$0xff]
        %v195 = vld [vmem:[%s161 + $0x30] sm:$0xff]
        %v196 = vld [vmem:[%s161 + $0x38] sm:$0xff]
        %205 = vrot.lane.b32.xlu0 %v189, 1
        %v206 = vpop.permute.xlu0 %205
        %207 = vrot.lane.b32.xlu0 %v190, 1
        %v208 = vpop.permute.xlu0 %207
        %209 = vrot.lane.b32.xlu0 %v191, 1
        %v210 = vpop.permute.xlu0 %209
        %211 = vrot.lane.b32.xlu0 %v192, 1
        %v212 = vpop.permute.xlu0 %211
        %213 = vrot.lane.b32.xlu0 %v193, 1
        %v214 = vpop.permute.xlu0 %213
        %215 = vrot.lane.b32.xlu0 %v194, 1
        %v216 = vpop.permute.xlu0 %215
        %217 = vrot.lane.b32.xlu0 %v195, 1
        %v218 = vpop.permute.xlu0 %217
        %219 = vrot.lane.b32.xlu0 %v196, 1
        %v220 = vpop.permute.xlu0 %219
        %vm229 = vcmask 7168
        %v230 = vsel %vm229, 0.0, %v206
        %v231 = vsel %vm229, 0.0, %v208
        %v232 = vsel %vm229, 0.0, %v210
        %v233 = vsel %vm229, 0.0, %v212
        %v234 = vsel %vm229, 0.0, %v214
        %v235 = vsel %vm229, 0.0, %v216
        %v236 = vsel %vm229, 0.0, %v218
        %v237 = vsel %vm229, 0.0, %v220
        %vm238 = vcmask 138240
        %v239 = vsel %vm238, %v230, 0.0
        %v240 = vsel %vm238, %v231, 0.0
        %v241 = vsel %vm238, %v232, 0.0
        %v242 = vsel %vm238, %v233, 0.0
        %v243 = vsel %vm238, %v234, 0.0
        %v244 = vsel %vm238, %v235, 0.0
        %v245 = vsel %vm238, %v236, 0.0
        %v246 = vsel %vm238, %v237, 0.0
        %vm255 = vcmask 1040384
        %v256 = vrot.slane %v239, 7
        %v257 = vrot.slane %v240, 7
        %v258 = vsel %vm255, %v256, %v257
        %v259 = vrot.slane %v241, 7
        %v260 = vrot.slane %v242, 7
        %v261 = vsel %vm255, %v259, %v260
        %v262 = vrot.slane %v243, 7
        %v263 = vrot.slane %v244, 7
        %v264 = vsel %vm255, %v262, %v263
        %v265 = vrot.slane %v245, 7
        %v266 = vrot.slane %v246, 7
        %v267 = vsel %vm255, %v265, %v266
        %v280 = vsel %vm255, 0.0, %v256
        %v281 = vsel %vm255, 0.0, %v259
        %v282 = vsel %vm255, 0.0, %v262
        %v283 = vsel %vm255, 0.0, %v265
        %v284 = vsel %vm255, %v257, 0.0
        %v285 = vsel %vm255, %v260, 0.0
        %v286 = vsel %vm255, %v263, 0.0
        %v287 = vsel %vm255, %v266, 0.0
        %292 = vrot.lane.b32.xlu0 %v280, 127
        %v293 = vpop.permute.xlu0 %292
        %294 = vrot.lane.b32.xlu0 %v258, 127
        %v295 = vpop.permute.xlu0 %294
        %296 = vrot.lane.b32.xlu0 %v281, 127
        %v297 = vpop.permute.xlu0 %296
        %298 = vrot.lane.b32.xlu0 %v261, 127
        %v299 = vpop.permute.xlu0 %298
        %300 = vrot.lane.b32.xlu0 %v282, 127
        %v301 = vpop.permute.xlu0 %300
        %302 = vrot.lane.b32.xlu0 %v264, 127
        %v303 = vpop.permute.xlu0 %302
        %304 = vrot.lane.b32.xlu0 %v283, 127
        %v305 = vpop.permute.xlu0 %304
        %306 = vrot.lane.b32.xlu0 %v267, 127
        %v307 = vpop.permute.xlu0 %306
        %316 = vrot.lane.b32.xlu0 %v280, 126
        %v317 = vpop.permute.xlu0 %316
        %318 = vrot.lane.b32.xlu0 %v258, 126
        %v319 = vpop.permute.xlu0 %318
        %320 = vrot.lane.b32.xlu0 %v281, 126
        %v321 = vpop.permute.xlu0 %320
        %322 = vrot.lane.b32.xlu0 %v261, 126
        %v323 = vpop.permute.xlu0 %322
        %324 = vrot.lane.b32.xlu0 %v282, 126
        %v325 = vpop.permute.xlu0 %324
        %326 = vrot.lane.b32.xlu0 %v264, 126
        %v327 = vpop.permute.xlu0 %326
        %328 = vrot.lane.b32.xlu0 %v283, 126
        %v329 = vpop.permute.xlu0 %328
        %330 = vrot.lane.b32.xlu0 %v267, 126
        %v331 = vpop.permute.xlu0 %330
        %vm344 = vcmask 1046528
        %v345 = vrot.slane %v280, 1
        %v346 = vrot.slane %v258, 1
        %v347 = vsel %vm344, %v345, %v346
        %v348 = vrot.slane %v284, 1
        %v349 = vsel %vm344, %v346, %v348
        %v350 = vrot.slane %v281, 1
        %v351 = vrot.slane %v261, 1
        %v352 = vsel %vm344, %v350, %v351
        %v353 = vrot.slane %v285, 1
        %v354 = vsel %vm344, %v351, %v353
        %v355 = vrot.slane %v282, 1
        %v356 = vrot.slane %v264, 1
        %v357 = vsel %vm344, %v355, %v356
        %v358 = vrot.slane %v286, 1
        %v359 = vsel %vm344, %v356, %v358
        %v360 = vrot.slane %v283, 1
        %v361 = vrot.slane %v267, 1
        %v362 = vsel %vm344, %v360, %v361
        %v363 = vrot.slane %v287, 1
        %v364 = vsel %vm344, %v361, %v363
        %373 = vrot.lane.b32.xlu0 %v347, 127
        %v374 = vpop.permute.xlu0 %373
        %375 = vrot.lane.b32.xlu0 %v349, 127
        %v376 = vpop.permute.xlu0 %375
        %377 = vrot.lane.b32.xlu0 %v352, 127
        %v378 = vpop.permute.xlu0 %377
        %379 = vrot.lane.b32.xlu0 %v354, 127
        %v380 = vpop.permute.xlu0 %379
        %381 = vrot.lane.b32.xlu0 %v357, 127
        %v382 = vpop.permute.xlu0 %381
        %383 = vrot.lane.b32.xlu0 %v359, 127
        %v384 = vpop.permute.xlu0 %383
        %385 = vrot.lane.b32.xlu0 %v362, 127
        %v386 = vpop.permute.xlu0 %385
        %387 = vrot.lane.b32.xlu0 %v364, 127
        %v388 = vpop.permute.xlu0 %387
        %397 = vrot.lane.b32.xlu0 %v347, 126
        %v398 = vpop.permute.xlu0 %397
        %399 = vrot.lane.b32.xlu0 %v349, 126
        %v400 = vpop.permute.xlu0 %399
        %401 = vrot.lane.b32.xlu0 %v352, 126
        %v402 = vpop.permute.xlu0 %401
        %403 = vrot.lane.b32.xlu0 %v354, 126
        %v404 = vpop.permute.xlu0 %403
        %405 = vrot.lane.b32.xlu0 %v357, 126
        %v406 = vpop.permute.xlu0 %405
        %407 = vrot.lane.b32.xlu0 %v359, 126
        %v408 = vpop.permute.xlu0 %407
        %409 = vrot.lane.b32.xlu0 %v362, 126
        %v410 = vpop.permute.xlu0 %409
        %411 = vrot.lane.b32.xlu0 %v364, 126
        %v412 = vpop.permute.xlu0 %411
        %vm421 = vcmask 1045504
        %v422 = vrot.slane %v280, 2
        %v423 = vrot.slane %v258, 2
        %v424 = vsel %vm421, %v422, %v423
        %v425 = vrot.slane %v284, 2
        %v426 = vsel %vm421, %v423, %v425
        %v427 = vrot.slane %v281, 2
        %v428 = vrot.slane %v261, 2
        %v429 = vsel %vm421, %v427, %v428
        %v430 = vrot.slane %v285, 2
        %v431 = vsel %vm421, %v428, %v430
        %v432 = vrot.slane %v282, 2
        %v433 = vrot.slane %v264, 2
        %v434 = vsel %vm421, %v432, %v433
        %v435 = vrot.slane %v286, 2
        %v436 = vsel %vm421, %v433, %v435
        %v437 = vrot.slane %v283, 2
        %v438 = vrot.slane %v267, 2
        %v439 = vsel %vm421, %v437, %v438
        %v440 = vrot.slane %v287, 2
        %v441 = vsel %vm421, %v438, %v440
        %450 = vrot.lane.b32.xlu0 %v424, 127
        %v451 = vpop.permute.xlu0 %450
        %452 = vrot.lane.b32.xlu0 %v426, 127
        %v453 = vpop.permute.xlu0 %452
        %454 = vrot.lane.b32.xlu0 %v429, 127
        %v455 = vpop.permute.xlu0 %454
        %456 = vrot.lane.b32.xlu0 %v431, 127
        %v457 = vpop.permute.xlu0 %456
        %458 = vrot.lane.b32.xlu0 %v434, 127
        %v459 = vpop.permute.xlu0 %458
        %460 = vrot.lane.b32.xlu0 %v436, 127
        %v461 = vpop.permute.xlu0 %460
        %462 = vrot.lane.b32.xlu0 %v439, 127
        %v463 = vpop.permute.xlu0 %462
        %464 = vrot.lane.b32.xlu0 %v441, 127
        %v465 = vpop.permute.xlu0 %464
        %474 = vrot.lane.b32.xlu0 %v424, 126
        %v475 = vpop.permute.xlu0 %474
        %476 = vrot.lane.b32.xlu0 %v426, 126
        %v477 = vpop.permute.xlu0 %476
        %478 = vrot.lane.b32.xlu0 %v429, 126
        %v479 = vpop.permute.xlu0 %478
        %480 = vrot.lane.b32.xlu0 %v431, 126
        %v481 = vpop.permute.xlu0 %480
        %482 = vrot.lane.b32.xlu0 %v434, 126
        %v483 = vpop.permute.xlu0 %482
        %484 = vrot.lane.b32.xlu0 %v436, 126
        %v485 = vpop.permute.xlu0 %484
        %486 = vrot.lane.b32.xlu0 %v439, 126
        %v487 = vpop.permute.xlu0 %486
        %488 = vrot.lane.b32.xlu0 %v441, 126
        %v489 = vpop.permute.xlu0 %488
        %v498 = vcombine.low %v280, %v282
        %v499 = vcombine.high %v280, %v282
        %v501 = vunpack.c.l.s4 1983009808
        %v502 = vunpack.c.0.s8 %v501
        %v503 = vlaneseq
        %v504 = vshrl.u32 %v503, 7
        %v505 = vsub.s32 %v502, %v504
        %v506 = vrot.slane %v498, %v505
        %v508 = vunpack.c.l.s4 1983009808
        %v509 = vunpack.c.0.s8 %v508
        %v510 = vlaneseq
        %v511 = vshrl.u32 %v510, 7
        %v512 = vsub.s32 %v509, %v511
        %v513 = vrot.slane %v499, %v512
        %v514 = vcombine.low %v281, %v283
        %v515 = vcombine.high %v281, %v283
        %v517 = vunpack.c.l.s4 1983009808
        %v518 = vunpack.c.0.s8 %v517
        %v519 = vlaneseq
        %v520 = vshrl.u32 %v519, 7
        %v521 = vsub.s32 %v518, %v520
        %v522 = vrot.slane %v514, %v521
        %v524 = vunpack.c.l.s4 1983009808
        %v525 = vunpack.c.0.s8 %v524
        %v526 = vlaneseq
        %v527 = vshrl.u32 %v526, 7
        %v528 = vsub.s32 %v525, %v527
        %v529 = vrot.slane %v515, %v528
        %v530 = vcombine.low %v293, %v301
        %v531 = vcombine.high %v293, %v301
        %v533 = vunpack.c.l.s4 1983009808
        %v534 = vunpack.c.0.s8 %v533
        %v535 = vlaneseq
        %v536 = vshrl.u32 %v535, 7
        %v537 = vsub.s32 %v534, %v536
        %v538 = vrot.slane %v530, %v537
        %v540 = vunpack.c.l.s4 1983009808
        %v541 = vunpack.c.0.s8 %v540
        %v542 = vlaneseq
        %v543 = vshrl.u32 %v542, 7
        %v544 = vsub.s32 %v541, %v543
        %v545 = vrot.slane %v531, %v544
        %v546 = vcombine.low %v297, %v305
        %v547 = vcombine.high %v297, %v305
        %v549 = vunpack.c.l.s4 1983009808
        %v550 = vunpack.c.0.s8 %v549
        %v551 = vlaneseq
        %v552 = vshrl.u32 %v551, 7
        %v553 = vsub.s32 %v550, %v552
        %v554 = vrot.slane %v546, %v553
        %v556 = vunpack.c.l.s4 1983009808
        %v557 = vunpack.c.0.s8 %v556
        %v558 = vlaneseq
        %v559 = vshrl.u32 %v558, 7
        %v560 = vsub.s32 %v557, %v559
        %v561 = vrot.slane %v547, %v560
        %v562 = vcombine.low %v506, %v522
        %v563 = vcombine.high %v506, %v522
        %v565 = vunpack.c.l.s4 1934713408
        %v566 = vunpack.c.0.s8 %v565
        %v567 = vlaneseq
        %v568 = vshrl.u32 %v567, 7
        %v569 = vsub.s32 %v566, %v568
        %v570 = vrot.slane %v562, %v569
        %v572 = vunpack.c.l.s4 1934713408
        %v573 = vunpack.c.0.s8 %v572
        %v574 = vlaneseq
        %v575 = vshrl.u32 %v574, 7
        %v576 = vsub.s32 %v573, %v575
        %v577 = vrot.slane %v563, %v576
        %v578 = vcombine.low %v513, %v529
        %v579 = vcombine.high %v513, %v529
        %v581 = vunpack.c.l.s4 1934713408
        %v582 = vunpack.c.0.s8 %v581
        %v583 = vlaneseq
        %v584 = vshrl.u32 %v583, 7
        %v585 = vsub.s32 %v582, %v584
        %v586 = vrot.slane %v578, %v585
        %v588 = vunpack.c.l.s4 1934713408
        %v589 = vunpack.c.0.s8 %v588
        %v590 = vlaneseq
        %v591 = vshrl.u32 %v590, 7
        %v592 = vsub.s32 %v589, %v591
        %v593 = vrot.slane %v579, %v592
        %v594 = vcombine.low %v538, %v554
        %v595 = vcombine.high %v538, %v554
        %v597 = vunpack.c.l.s4 1934713408
        %v598 = vunpack.c.0.s8 %v597
        %v599 = vlaneseq
        %v600 = vshrl.u32 %v599, 7
        %v601 = vsub.s32 %v598, %v600
        %v602 = vrot.slane %v594, %v601
        %v604 = vunpack.c.l.s4 1934713408
        %v605 = vunpack.c.0.s8 %v604
        %v606 = vlaneseq
        %v607 = vshrl.u32 %v606, 7
        %v608 = vsub.s32 %v605, %v607
        %v609 = vrot.slane %v595, %v608
        %v610 = vcombine.low %v545, %v561
        %v611 = vcombine.high %v545, %v561
        %v613 = vunpack.c.l.s4 1934713408
        %v614 = vunpack.c.0.s8 %v613
        %v615 = vlaneseq
        %v616 = vshrl.u32 %v615, 7
        %v617 = vsub.s32 %v614, %v616
        %v618 = vrot.slane %v610, %v617
        %v620 = vunpack.c.l.s4 1934713408
        %v621 = vunpack.c.0.s8 %v620
        %v622 = vlaneseq
        %v623 = vshrl.u32 %v622, 7
        %v624 = vsub.s32 %v621, %v623
        %v625 = vrot.slane %v611, %v624
        %v626 = vcombine.low %v570, %v602
        %v627 = vcombine.high %v570, %v602
        %v628 = vcombine.low %v577, %v609
        %v629 = vcombine.high %v577, %v609
        %v630 = vcombine.low %v586, %v618
        %v631 = vcombine.high %v586, %v618
        %v632 = vcombine.low %v593, %v625
        %v633 = vcombine.high %v593, %v625
        %v634 = vcombine.low %v317, %v325
        %v635 = vcombine.high %v317, %v325
        %v637 = vunpack.c.l.s4 1983009808
        %v638 = vunpack.c.0.s8 %v637
        %v639 = vlaneseq
        %v640 = vshrl.u32 %v639, 7
        %v641 = vsub.s32 %v638, %v640
        %v642 = vrot.slane %v634, %v641
        %v644 = vunpack.c.l.s4 1983009808
        %v645 = vunpack.c.0.s8 %v644
        %v646 = vlaneseq
        %v647 = vshrl.u32 %v646, 7
        %v648 = vsub.s32 %v645, %v647
        %v649 = vrot.slane %v635, %v648
        %v650 = vcombine.low %v321, %v329
        %v651 = vcombine.high %v321, %v329
        %v653 = vunpack.c.l.s4 1983009808
        %v654 = vunpack.c.0.s8 %v653
        %v655 = vlaneseq
        %v656 = vshrl.u32 %v655, 7
        %v657 = vsub.s32 %v654, %v656
        %v658 = vrot.slane %v650, %v657
        %v660 = vunpack.c.l.s4 1983009808
        %v661 = vunpack.c.0.s8 %v660
        %v662 = vlaneseq
        %v663 = vshrl.u32 %v662, 7
        %v664 = vsub.s32 %v661, %v663
        %v665 = vrot.slane %v651, %v664
        %v666 = vcombine.low %v347, %v357
        %v667 = vcombine.high %v347, %v357
        %v669 = vunpack.c.l.s4 1983009808
        %v670 = vunpack.c.0.s8 %v669
        %v671 = vlaneseq
        %v672 = vshrl.u32 %v671, 7
        %v673 = vsub.s32 %v670, %v672
        %v674 = vrot.slane %v666, %v673
        %v676 = vunpack.c.l.s4 1983009808
        %v677 = vunpack.c.0.s8 %v676
        %v678 = vlaneseq
        %v679 = vshrl.u32 %v678, 7
        %v680 = vsub.s32 %v677, %v679
        %v681 = vrot.slane %v667, %v680
        %v682 = vcombine.low %v352, %v362
        %v683 = vcombine.high %v352, %v362
        %v685 = vunpack.c.l.s4 1983009808
        %v686 = vunpack.c.0.s8 %v685
        %v687 = vlaneseq
        %v688 = vshrl.u32 %v687, 7
        %v689 = vsub.s32 %v686, %v688
        %v690 = vrot.slane %v682, %v689
        %v692 = vunpack.c.l.s4 1983009808
        %v693 = vunpack.c.0.s8 %v692
        %v694 = vlaneseq
        %v695 = vshrl.u32 %v694, 7
        %v696 = vsub.s32 %v693, %v695
        %v697 = vrot.slane %v683, %v696
        %v698 = vcombine.low %v642, %v658
        %v699 = vcombine.high %v642, %v658
        %v701 = vunpack.c.l.s4 1934713408
        %v702 = vunpack.c.0.s8 %v701
        %v703 = vlaneseq
        %v704 = vshrl.u32 %v703, 7
        %v705 = vsub.s32 %v702, %v704
        %v706 = vrot.slane %v698, %v705
        %v708 = vunpack.c.l.s4 1934713408
        %v709 = vunpack.c.0.s8 %v708
        %v710 = vlaneseq
        %v711 = vshrl.u32 %v710, 7
        %v712 = vsub.s32 %v709, %v711
        %v713 = vrot.slane %v699, %v712
        %v714 = vcombine.low %v649, %v665
        %v715 = vcombine.high %v649, %v665
        %v717 = vunpack.c.l.s4 1934713408
        %v718 = vunpack.c.0.s8 %v717
        %v719 = vlaneseq
        %v720 = vshrl.u32 %v719, 7
        %v721 = vsub.s32 %v718, %v720
        %v722 = vrot.slane %v714, %v721
        %v724 = vunpack.c.l.s4 1934713408
        %v725 = vunpack.c.0.s8 %v724
        %v726 = vlaneseq
        %v727 = vshrl.u32 %v726, 7
        %v728 = vsub.s32 %v725, %v727
        %v729 = vrot.slane %v715, %v728
        %v730 = vcombine.low %v674, %v690
        %v731 = vcombine.high %v674, %v690
        %v733 = vunpack.c.l.s4 1934713408
        %v734 = vunpack.c.0.s8 %v733
        %v735 = vlaneseq
        %v736 = vshrl.u32 %v735, 7
        %v737 = vsub.s32 %v734, %v736
        %v738 = vrot.slane %v730, %v737
        %v740 = vunpack.c.l.s4 1934713408
        %v741 = vunpack.c.0.s8 %v740
        %v742 = vlaneseq
        %v743 = vshrl.u32 %v742, 7
        %v744 = vsub.s32 %v741, %v743
        %v745 = vrot.slane %v731, %v744
        %v746 = vcombine.low %v681, %v697
        %v747 = vcombine.high %v681, %v697
        %v749 = vunpack.c.l.s4 1934713408
        %v750 = vunpack.c.0.s8 %v749
        %v751 = vlaneseq
        %v752 = vshrl.u32 %v751, 7
        %v753 = vsub.s32 %v750, %v752
        %v754 = vrot.slane %v746, %v753
        %v756 = vunpack.c.l.s4 1934713408
        %v757 = vunpack.c.0.s8 %v756
        %v758 = vlaneseq
        %v759 = vshrl.u32 %v758, 7
        %v760 = vsub.s32 %v757, %v759
        %v761 = vrot.slane %v747, %v760
        %v762 = vcombine.low %v706, %v738
        %v763 = vcombine.high %v706, %v738
        %v764 = vcombine.low %v713, %v745
        %v765 = vcombine.high %v713, %v745
        %v766 = vcombine.low %v722, %v754
        %v767 = vcombine.high %v722, %v754
        %v768 = vcombine.low %v729, %v761
        %v769 = vcombine.high %v729, %v761
        %v770 = vcombine.low %v374, %v382
        %v771 = vcombine.high %v374, %v382
        %v773 = vunpack.c.l.s4 1983009808
        %v774 = vunpack.c.0.s8 %v773
        %v775 = vlaneseq
        %v776 = vshrl.u32 %v775, 7
        %v777 = vsub.s32 %v774, %v776
        %v778 = vrot.slane %v770, %v777
        %v780 = vunpack.c.l.s4 1983009808
        %v781 = vunpack.c.0.s8 %v780
        %v782 = vlaneseq
        %v783 = vshrl.u32 %v782, 7
        %v784 = vsub.s32 %v781, %v783
        %v785 = vrot.slane %v771, %v784
        %v786 = vcombine.low %v378, %v386
        %v787 = vcombine.high %v378, %v386
        %v789 = vunpack.c.l.s4 1983009808
        %v790 = vunpack.c.0.s8 %v789
        %v791 = vlaneseq
        %v792 = vshrl.u32 %v791, 7
        %v793 = vsub.s32 %v790, %v792
        %v794 = vrot.slane %v786, %v793
        %v796 = vunpack.c.l.s4 1983009808
        %v797 = vunpack.c.0.s8 %v796
        %v798 = vlaneseq
        %v799 = vshrl.u32 %v798, 7
        %v800 = vsub.s32 %v797, %v799
        %v801 = vrot.slane %v787, %v800
        %v802 = vcombine.low %v398, %v406
        %v803 = vcombine.high %v398, %v406
        %v805 = vunpack.c.l.s4 1983009808
        %v806 = vunpack.c.0.s8 %v805
        %v807 = vlaneseq
        %v808 = vshrl.u32 %v807, 7
        %v809 = vsub.s32 %v806, %v808
        %v810 = vrot.slane %v802, %v809
        %v812 = vunpack.c.l.s4 1983009808
        %v813 = vunpack.c.0.s8 %v812
        %v814 = vlaneseq
        %v815 = vshrl.u32 %v814, 7
        %v816 = vsub.s32 %v813, %v815
        %v817 = vrot.slane %v803, %v816
        %v818 = vcombine.low %v402, %v410
        %v819 = vcombine.high %v402, %v410
        %v821 = vunpack.c.l.s4 1983009808
        %v822 = vunpack.c.0.s8 %v821
        %v823 = vlaneseq
        %v824 = vshrl.u32 %v823, 7
        %v825 = vsub.s32 %v822, %v824
        %v826 = vrot.slane %v818, %v825
        %v828 = vunpack.c.l.s4 1983009808
        %v829 = vunpack.c.0.s8 %v828
        %v830 = vlaneseq
        %v831 = vshrl.u32 %v830, 7
        %v832 = vsub.s32 %v829, %v831
        %v833 = vrot.slane %v819, %v832
        %v834 = vcombine.low %v778, %v794
        %v835 = vcombine.high %v778, %v794
        %v837 = vunpack.c.l.s4 1934713408
        %v838 = vunpack.c.0.s8 %v837
        %v839 = vlaneseq
        %v840 = vshrl.u32 %v839, 7
        %v841 = vsub.s32 %v838, %v840
        %v842 = vrot.slane %v834, %v841
        %v844 = vunpack.c.l.s4 1934713408
        %v845 = vunpack.c.0.s8 %v844
        %v846 = vlaneseq
        %v847 = vshrl.u32 %v846, 7
        %v848 = vsub.s32 %v845, %v847
        %v849 = vrot.slane %v835, %v848
        %v850 = vcombine.low %v785, %v801
        %v851 = vcombine.high %v785, %v801
        %v853 = vunpack.c.l.s4 1934713408
        %v854 = vunpack.c.0.s8 %v853
        %v855 = vlaneseq
        %v856 = vshrl.u32 %v855, 7
        %v857 = vsub.s32 %v854, %v856
        %v858 = vrot.slane %v850, %v857
        %v860 = vunpack.c.l.s4 1934713408
        %v861 = vunpack.c.0.s8 %v860
        %v862 = vlaneseq
        %v863 = vshrl.u32 %v862, 7
        %v864 = vsub.s32 %v861, %v863
        %v865 = vrot.slane %v851, %v864
        %v866 = vcombine.low %v810, %v826
        %v867 = vcombine.high %v810, %v826
        %v869 = vunpack.c.l.s4 1934713408
        %v870 = vunpack.c.0.s8 %v869
        %v871 = vlaneseq
        %v872 = vshrl.u32 %v871, 7
        %v873 = vsub.s32 %v870, %v872
        %v874 = vrot.slane %v866, %v873
        %v876 = vunpack.c.l.s4 1934713408
        %v877 = vunpack.c.0.s8 %v876
        %v878 = vlaneseq
        %v879 = vshrl.u32 %v878, 7
        %v880 = vsub.s32 %v877, %v879
        %v881 = vrot.slane %v867, %v880
        %v882 = vcombine.low %v817, %v833
        %v883 = vcombine.high %v817, %v833
        %v885 = vunpack.c.l.s4 1934713408
        %v886 = vunpack.c.0.s8 %v885
        %v887 = vlaneseq
        %v888 = vshrl.u32 %v887, 7
        %v889 = vsub.s32 %v886, %v888
        %v890 = vrot.slane %v882, %v889
        %v892 = vunpack.c.l.s4 1934713408
        %v893 = vunpack.c.0.s8 %v892
        %v894 = vlaneseq
        %v895 = vshrl.u32 %v894, 7
        %v896 = vsub.s32 %v893, %v895
        %v897 = vrot.slane %v883, %v896
        %v898 = vcombine.low %v842, %v874
        %v899 = vcombine.high %v842, %v874
        %v900 = vcombine.low %v849, %v881
        %v901 = vcombine.high %v849, %v881
        %v902 = vcombine.low %v858, %v890
        %v903 = vcombine.high %v858, %v890
        %v904 = vcombine.low %v865, %v897
        %v905 = vcombine.high %v865, %v897
        %v906 = vcombine.low %v424, %v434
        %v907 = vcombine.high %v424, %v434
        %v909 = vunpack.c.l.s4 1983009808
        %v910 = vunpack.c.0.s8 %v909
        %v911 = vlaneseq
        %v912 = vshrl.u32 %v911, 7
        %v913 = vsub.s32 %v910, %v912
        %v914 = vrot.slane %v906, %v913
        %v916 = vunpack.c.l.s4 1983009808
        %v917 = vunpack.c.0.s8 %v916
        %v918 = vlaneseq
        %v919 = vshrl.u32 %v918, 7
        %v920 = vsub.s32 %v917, %v919
        %v921 = vrot.slane %v907, %v920
        %v922 = vcombine.low %v429, %v439
        %v923 = vcombine.high %v429, %v439
        %v925 = vunpack.c.l.s4 1983009808
        %v926 = vunpack.c.0.s8 %v925
        %v927 = vlaneseq
        %v928 = vshrl.u32 %v927, 7
        %v929 = vsub.s32 %v926, %v928
        %v930 = vrot.slane %v922, %v929
        %v932 = vunpack.c.l.s4 1983009808
        %v933 = vunpack.c.0.s8 %v932
        %v934 = vlaneseq
        %v935 = vshrl.u32 %v934, 7
        %v936 = vsub.s32 %v933, %v935
        %v937 = vrot.slane %v923, %v936
        %v938 = vcombine.low %v451, %v459
        %v939 = vcombine.high %v451, %v459
        %v941 = vunpack.c.l.s4 1983009808
        %v942 = vunpack.c.0.s8 %v941
        %v943 = vlaneseq
        %v944 = vshrl.u32 %v943, 7
        %v945 = vsub.s32 %v942, %v944
        %v946 = vrot.slane %v938, %v945
        %v948 = vunpack.c.l.s4 1983009808
        %v949 = vunpack.c.0.s8 %v948
        %v950 = vlaneseq
        %v951 = vshrl.u32 %v950, 7
        %v952 = vsub.s32 %v949, %v951
        %v953 = vrot.slane %v939, %v952
        %v954 = vcombine.low %v455, %v463
        %v955 = vcombine.high %v455, %v463
        %v957 = vunpack.c.l.s4 1983009808
        %v958 = vunpack.c.0.s8 %v957
        %v959 = vlaneseq
        %v960 = vshrl.u32 %v959, 7
        %v961 = vsub.s32 %v958, %v960
        %v962 = vrot.slane %v954, %v961
        %v964 = vunpack.c.l.s4 1983009808
        %v965 = vunpack.c.0.s8 %v964
        %v966 = vlaneseq
        %v967 = vshrl.u32 %v966, 7
        %v968 = vsub.s32 %v965, %v967
        %v969 = vrot.slane %v955, %v968
        %v970 = vcombine.low %v914, %v930
        %v971 = vcombine.high %v914, %v930
        %v973 = vunpack.c.l.s4 1934713408
        %v974 = vunpack.c.0.s8 %v973
        %v975 = vlaneseq
        %v976 = vshrl.u32 %v975, 7
        %v977 = vsub.s32 %v974, %v976
        %v978 = vrot.slane %v970, %v977
        %v980 = vunpack.c.l.s4 1934713408
        %v981 = vunpack.c.0.s8 %v980
        %v982 = vlaneseq
        %v983 = vshrl.u32 %v982, 7
        %v984 = vsub.s32 %v981, %v983
        %v985 = vrot.slane %v971, %v984
        %v986 = vcombine.low %v921, %v937
        %v987 = vcombine.high %v921, %v937
        %v989 = vunpack.c.l.s4 1934713408
        %v990 = vunpack.c.0.s8 %v989
        %v991 = vlaneseq
        %v992 = vshrl.u32 %v991, 7
        %v993 = vsub.s32 %v990, %v992
        %v994 = vrot.slane %v986, %v993
        %v996 = vunpack.c.l.s4 1934713408
        %v997 = vunpack.c.0.s8 %v996
        %v998 = vlaneseq
        %v999 = vshrl.u32 %v998, 7
        %v1000 = vsub.s32 %v997, %v999
        %v1001 = vrot.slane %v987, %v1000
        %v1002 = vcombine.low %v946, %v962
        %v1003 = vcombine.high %v946, %v962
        %v1005 = vunpack.c.l.s4 1934713408
        %v1006 = vunpack.c.0.s8 %v1005
        %v1007 = vlaneseq
        %v1008 = vshrl.u32 %v1007, 7
        %v1009 = vsub.s32 %v1006, %v1008
        %v1010 = vrot.slane %v1002, %v1009
        %v1012 = vunpack.c.l.s4 1934713408
        %v1013 = vunpack.c.0.s8 %v1012
        %v1014 = vlaneseq
        %v1015 = vshrl.u32 %v1014, 7
        %v1016 = vsub.s32 %v1013, %v1015
        %v1017 = vrot.slane %v1003, %v1016
        %v1018 = vcombine.low %v953, %v969
        %v1019 = vcombine.high %v953, %v969
        %v1021 = vunpack.c.l.s4 1934713408
        %v1022 = vunpack.c.0.s8 %v1021
        %v1023 = vlaneseq
        %v1024 = vshrl.u32 %v1023, 7
        %v1025 = vsub.s32 %v1022, %v1024
        %v1026 = vrot.slane %v1018, %v1025
        %v1028 = vunpack.c.l.s4 1934713408
        %v1029 = vunpack.c.0.s8 %v1028
        %v1030 = vlaneseq
        %v1031 = vshrl.u32 %v1030, 7
        %v1032 = vsub.s32 %v1029, %v1031
        %v1033 = vrot.slane %v1019, %v1032
        %v1034 = vcombine.low %v978, %v1010
        %v1035 = vcombine.high %v978, %v1010
        %v1036 = vcombine.low %v985, %v1017
        %v1037 = vcombine.high %v985, %v1017
        %v1038 = vcombine.low %v994, %v1026
        %v1039 = vcombine.high %v994, %v1026
        %v1040 = vcombine.low %v1001, %v1033
        %v1041 = vcombine.high %v1001, %v1033
        %v1042 = vcombine.low %v475, %v483
        %v1043 = vcombine.high %v475, %v483
        %v1045 = vunpack.c.l.s4 1983009808
        %v1046 = vunpack.c.0.s8 %v1045
        %v1047 = vlaneseq
        %v1048 = vshrl.u32 %v1047, 7
        %v1049 = vsub.s32 %v1046, %v1048
        %v1050 = vrot.slane %v1042, %v1049
        %v1052 = vunpack.c.l.s4 1983009808
        %v1053 = vunpack.c.0.s8 %v1052
        %v1054 = vlaneseq
        %v1055 = vshrl.u32 %v1054, 7
        %v1056 = vsub.s32 %v1053, %v1055
        %v1057 = vrot.slane %v1043, %v1056
        %v1058 = vcombine.low %v479, %v487
        %v1059 = vcombine.high %v479, %v487
        %v1061 = vunpack.c.l.s4 1983009808
        %v1062 = vunpack.c.0.s8 %v1061
        %v1063 = vlaneseq
        %v1064 = vshrl.u32 %v1063, 7
        %v1065 = vsub.s32 %v1062, %v1064
        %v1066 = vrot.slane %v1058, %v1065
        %v1068 = vunpack.c.l.s4 1983009808
        %v1069 = vunpack.c.0.s8 %v1068
        %v1070 = vlaneseq
        %v1071 = vshrl.u32 %v1070, 7
        %v1072 = vsub.s32 %v1069, %v1071
        %v1073 = vrot.slane %v1059, %v1072
        %v1074 = vcombine.low %v1050, %v1066
        %v1075 = vcombine.high %v1050, %v1066
        %v1077 = vunpack.c.l.s4 1934713408
        %v1078 = vunpack.c.0.s8 %v1077
        %v1079 = vlaneseq
        %v1080 = vshrl.u32 %v1079, 7
        %v1081 = vsub.s32 %v1078, %v1080
        %v1082 = vrot.slane %v1074, %v1081
        %v1084 = vunpack.c.l.s4 1934713408
        %v1085 = vunpack.c.0.s8 %v1084
        %v1086 = vlaneseq
        %v1087 = vshrl.u32 %v1086, 7
        %v1088 = vsub.s32 %v1085, %v1087
        %v1089 = vrot.slane %v1075, %v1088
        %v1090 = vcombine.low %v1057, %v1073
        %v1091 = vcombine.high %v1057, %v1073
        %v1093 = vunpack.c.l.s4 1934713408
        %v1094 = vunpack.c.0.s8 %v1093
        %v1095 = vlaneseq
        %v1096 = vshrl.u32 %v1095, 7
        %v1097 = vsub.s32 %v1094, %v1096
        %v1098 = vrot.slane %v1090, %v1097
        %v1100 = vunpack.c.l.s4 1934713408
        %v1101 = vunpack.c.0.s8 %v1100
        %v1102 = vlaneseq
        %v1103 = vshrl.u32 %v1102, 7
        %v1104 = vsub.s32 %v1101, %v1103
        %v1105 = vrot.slane %v1091, %v1104
        %v1106 = vcombine.high %v1082, 0.0
        %v1107 = vcombine.high %v1089, 0.0
        %v1108 = vcombine.high %v1098, 0.0
        %v1109 = vcombine.high %v1105, 0.0
        %v1110 = vcombine.low %v258, %v264
        %v1111 = vcombine.high %v258, %v264
        %v1113 = vunpack.c.l.s4 1983009808
        %v1114 = vunpack.c.0.s8 %v1113
        %v1115 = vlaneseq
        %v1116 = vshrl.u32 %v1115, 7
        %v1117 = vsub.s32 %v1114, %v1116
        %v1118 = vrot.slane %v1110, %v1117
        %v1120 = vunpack.c.l.s4 1983009808
        %v1121 = vunpack.c.0.s8 %v1120
        %v1122 = vlaneseq
        %v1123 = vshrl.u32 %v1122, 7
        %v1124 = vsub.s32 %v1121, %v1123
        %v1125 = vrot.slane %v1111, %v1124
        %v1126 = vcombine.low %v261, %v267
        %v1127 = vcombine.high %v261, %v267
        %v1129 = vunpack.c.l.s4 1983009808
        %v1130 = vunpack.c.0.s8 %v1129
        %v1131 = vlaneseq
        %v1132 = vshrl.u32 %v1131, 7
        %v1133 = vsub.s32 %v1130, %v1132
        %v1134 = vrot.slane %v1126, %v1133
        %v1136 = vunpack.c.l.s4 1983009808
        %v1137 = vunpack.c.0.s8 %v1136
        %v1138 = vlaneseq
        %v1139 = vshrl.u32 %v1138, 7
        %v1140 = vsub.s32 %v1137, %v1139
        %v1141 = vrot.slane %v1127, %v1140
        %v1142 = vcombine.low %v295, %v303
        %v1143 = vcombine.high %v295, %v303
        %v1145 = vunpack.c.l.s4 1983009808
        %v1146 = vunpack.c.0.s8 %v1145
        %v1147 = vlaneseq
        %v1148 = vshrl.u32 %v1147, 7
        %v1149 = vsub.s32 %v1146, %v1148
        %v1150 = vrot.slane %v1142, %v1149
        %v1152 = vunpack.c.l.s4 1983009808
        %v1153 = vunpack.c.0.s8 %v1152
        %v1154 = vlaneseq
        %v1155 = vshrl.u32 %v1154, 7
        %v1156 = vsub.s32 %v1153, %v1155
        %v1157 = vrot.slane %v1143, %v1156
        %v1158 = vcombine.low %v299, %v307
        %v1159 = vcombine.high %v299, %v307
        %v1161 = vunpack.c.l.s4 1983009808
        %v1162 = vunpack.c.0.s8 %v1161
        %v1163 = vlaneseq
        %v1164 = vshrl.u32 %v1163, 7
        %v1165 = vsub.s32 %v1162, %v1164
        %v1166 = vrot.slane %v1158, %v1165
        %v1168 = vunpack.c.l.s4 1983009808
        %v1169 = vunpack.c.0.s8 %v1168
        %v1170 = vlaneseq
        %v1171 = vshrl.u32 %v1170, 7
        %v1172 = vsub.s32 %v1169, %v1171
        %v1173 = vrot.slane %v1159, %v1172
        %v1174 = vcombine.low %v1118, %v1134
        %v1175 = vcombine.high %v1118, %v1134
        %v1177 = vunpack.c.l.s4 1934713408
        %v1178 = vunpack.c.0.s8 %v1177
        %v1179 = vlaneseq
        %v1180 = vshrl.u32 %v1179, 7
        %v1181 = vsub.s32 %v1178, %v1180
        %v1182 = vrot.slane %v1174, %v1181
        %v1184 = vunpack.c.l.s4 1934713408
        %v1185 = vunpack.c.0.s8 %v1184
        %v1186 = vlaneseq
        %v1187 = vshrl.u32 %v1186, 7
        %v1188 = vsub.s32 %v1185, %v1187
        %v1189 = vrot.slane %v1175, %v1188
        %v1190 = vcombine.low %v1125, %v1141
        %v1191 = vcombine.high %v1125, %v1141
        %v1193 = vunpack.c.l.s4 1934713408
        %v1194 = vunpack.c.0.s8 %v1193
        %v1195 = vlaneseq
        %v1196 = vshrl.u32 %v1195, 7
        %v1197 = vsub.s32 %v1194, %v1196
        %v1198 = vrot.slane %v1190, %v1197
        %v1200 = vunpack.c.l.s4 1934713408
        %v1201 = vunpack.c.0.s8 %v1200
        %v1202 = vlaneseq
        %v1203 = vshrl.u32 %v1202, 7
        %v1204 = vsub.s32 %v1201, %v1203
        %v1205 = vrot.slane %v1191, %v1204
        %v1206 = vcombine.low %v1150, %v1166
        %v1207 = vcombine.high %v1150, %v1166
        %v1209 = vunpack.c.l.s4 1934713408
        %v1210 = vunpack.c.0.s8 %v1209
        %v1211 = vlaneseq
        %v1212 = vshrl.u32 %v1211, 7
        %v1213 = vsub.s32 %v1210, %v1212
        %v1214 = vrot.slane %v1206, %v1213
        %v1216 = vunpack.c.l.s4 1934713408
        %v1217 = vunpack.c.0.s8 %v1216
        %v1218 = vlaneseq
        %v1219 = vshrl.u32 %v1218, 7
        %v1220 = vsub.s32 %v1217, %v1219
        %v1221 = vrot.slane %v1207, %v1220
        %v1222 = vcombine.low %v1157, %v1173
        %v1223 = vcombine.high %v1157, %v1173
        %v1225 = vunpack.c.l.s4 1934713408
        %v1226 = vunpack.c.0.s8 %v1225
        %v1227 = vlaneseq
        %v1228 = vshrl.u32 %v1227, 7
        %v1229 = vsub.s32 %v1226, %v1228
        %v1230 = vrot.slane %v1222, %v1229
        %v1232 = vunpack.c.l.s4 1934713408
        %v1233 = vunpack.c.0.s8 %v1232
        %v1234 = vlaneseq
        %v1235 = vshrl.u32 %v1234, 7
        %v1236 = vsub.s32 %v1233, %v1235
        %v1237 = vrot.slane %v1223, %v1236
        %v1238 = vcombine.low %v1182, %v1214
        %v1239 = vcombine.high %v1182, %v1214
        %v1240 = vcombine.low %v1189, %v1221
        %v1241 = vcombine.high %v1189, %v1221
        %v1242 = vcombine.low %v1198, %v1230
        %v1243 = vcombine.high %v1198, %v1230
        %v1244 = vcombine.low %v1205, %v1237
        %v1245 = vcombine.high %v1205, %v1237
        %v1246 = vcombine.low %v319, %v327
        %v1247 = vcombine.high %v319, %v327
        %v1249 = vunpack.c.l.s4 1983009808
        %v1250 = vunpack.c.0.s8 %v1249
        %v1251 = vlaneseq
        %v1252 = vshrl.u32 %v1251, 7
        %v1253 = vsub.s32 %v1250, %v1252
        %v1254 = vrot.slane %v1246, %v1253
        %v1256 = vunpack.c.l.s4 1983009808
        %v1257 = vunpack.c.0.s8 %v1256
        %v1258 = vlaneseq
        %v1259 = vshrl.u32 %v1258, 7
        %v1260 = vsub.s32 %v1257, %v1259
        %v1261 = vrot.slane %v1247, %v1260
        %v1262 = vcombine.low %v323, %v331
        %v1263 = vcombine.high %v323, %v331
        %v1265 = vunpack.c.l.s4 1983009808
        %v1266 = vunpack.c.0.s8 %v1265
        %v1267 = vlaneseq
        %v1268 = vshrl.u32 %v1267, 7
        %v1269 = vsub.s32 %v1266, %v1268
        %v1270 = vrot.slane %v1262, %v1269
        %v1272 = vunpack.c.l.s4 1983009808
        %v1273 = vunpack.c.0.s8 %v1272
        %v1274 = vlaneseq
        %v1275 = vshrl.u32 %v1274, 7
        %v1276 = vsub.s32 %v1273, %v1275
        %v1277 = vrot.slane %v1263, %v1276
        %v1278 = vcombine.low %v349, %v359
        %v1279 = vcombine.high %v349, %v359
        %v1281 = vunpack.c.l.s4 1983009808
        %v1282 = vunpack.c.0.s8 %v1281
        %v1283 = vlaneseq
        %v1284 = vshrl.u32 %v1283, 7
        %v1285 = vsub.s32 %v1282, %v1284
        %v1286 = vrot.slane %v1278, %v1285
        %v1288 = vunpack.c.l.s4 1983009808
        %v1289 = vunpack.c.0.s8 %v1288
        %v1290 = vlaneseq
        %v1291 = vshrl.u32 %v1290, 7
        %v1292 = vsub.s32 %v1289, %v1291
        %v1293 = vrot.slane %v1279, %v1292
        %v1294 = vcombine.low %v354, %v364
        %v1295 = vcombine.high %v354, %v364
        %v1297 = vunpack.c.l.s4 1983009808
        %v1298 = vunpack.c.0.s8 %v1297
        %v1299 = vlaneseq
        %v1300 = vshrl.u32 %v1299, 7
        %v1301 = vsub.s32 %v1298, %v1300
        %v1302 = vrot.slane %v1294, %v1301
        %v1304 = vunpack.c.l.s4 1983009808
        %v1305 = vunpack.c.0.s8 %v1304
        %v1306 = vlaneseq
        %v1307 = vshrl.u32 %v1306, 7
        %v1308 = vsub.s32 %v1305, %v1307
        %v1309 = vrot.slane %v1295, %v1308
        %v1310 = vcombine.low %v1254, %v1270
        %v1311 = vcombine.high %v1254, %v1270
        %v1313 = vunpack.c.l.s4 1934713408
        %v1314 = vunpack.c.0.s8 %v1313
        %v1315 = vlaneseq
        %v1316 = vshrl.u32 %v1315, 7
        %v1317 = vsub.s32 %v1314, %v1316
        %v1318 = vrot.slane %v1310, %v1317
        %v1320 = vunpack.c.l.s4 1934713408
        %v1321 = vunpack.c.0.s8 %v1320
        %v1322 = vlaneseq
        %v1323 = vshrl.u32 %v1322, 7
        %v1324 = vsub.s32 %v1321, %v1323
        %v1325 = vrot.slane %v1311, %v1324
        %v1326 = vcombine.low %v1261, %v1277
        %v1327 = vcombine.high %v1261, %v1277
        %v1329 = vunpack.c.l.s4 1934713408
        %v1330 = vunpack.c.0.s8 %v1329
        %v1331 = vlaneseq
        %v1332 = vshrl.u32 %v1331, 7
        %v1333 = vsub.s32 %v1330, %v1332
        %v1334 = vrot.slane %v1326, %v1333
        %v1336 = vunpack.c.l.s4 1934713408
        %v1337 = vunpack.c.0.s8 %v1336
        %v1338 = vlaneseq
        %v1339 = vshrl.u32 %v1338, 7
        %v1340 = vsub.s32 %v1337, %v1339
        %v1341 = vrot.slane %v1327, %v1340
        %v1342 = vcombine.low %v1286, %v1302
        %v1343 = vcombine.high %v1286, %v1302
        %v1345 = vunpack.c.l.s4 1934713408
        %v1346 = vunpack.c.0.s8 %v1345
        %v1347 = vlaneseq
        %v1348 = vshrl.u32 %v1347, 7
        %v1349 = vsub.s32 %v1346, %v1348
        %v1350 = vrot.slane %v1342, %v1349
        %v1352 = vunpack.c.l.s4 1934713408
        %v1353 = vunpack.c.0.s8 %v1352
        %v1354 = vlaneseq
        %v1355 = vshrl.u32 %v1354, 7
        %v1356 = vsub.s32 %v1353, %v1355
        %v1357 = vrot.slane %v1343, %v1356
        %v1358 = vcombine.low %v1293, %v1309
        %v1359 = vcombine.high %v1293, %v1309
        %v1361 = vunpack.c.l.s4 1934713408
        %v1362 = vunpack.c.0.s8 %v1361
        %v1363 = vlaneseq
        %v1364 = vshrl.u32 %v1363, 7
        %v1365 = vsub.s32 %v1362, %v1364
        %v1366 = vrot.slane %v1358, %v1365
        %v1368 = vunpack.c.l.s4 1934713408
        %v1369 = vunpack.c.0.s8 %v1368
        %v1370 = vlaneseq
        %v1371 = vshrl.u32 %v1370, 7
        %v1372 = vsub.s32 %v1369, %v1371
        %v1373 = vrot.slane %v1359, %v1372
        %v1374 = vcombine.low %v1318, %v1350
        %v1375 = vcombine.high %v1318, %v1350
        %v1376 = vcombine.low %v1325, %v1357
        %v1377 = vcombine.high %v1325, %v1357
        %v1378 = vcombine.low %v1334, %v1366
        %v1379 = vcombine.high %v1334, %v1366
        %v1380 = vcombine.low %v1341, %v1373
        %v1381 = vcombine.high %v1341, %v1373
        %v1382 = vcombine.low %v376, %v384
        %v1383 = vcombine.high %v376, %v384
        %v1385 = vunpack.c.l.s4 1983009808
        %v1386 = vunpack.c.0.s8 %v1385
        %v1387 = vlaneseq
        %v1388 = vshrl.u32 %v1387, 7
        %v1389 = vsub.s32 %v1386, %v1388
        %v1390 = vrot.slane %v1382, %v1389
        %v1392 = vunpack.c.l.s4 1983009808
        %v1393 = vunpack.c.0.s8 %v1392
        %v1394 = vlaneseq
        %v1395 = vshrl.u32 %v1394, 7
        %v1396 = vsub.s32 %v1393, %v1395
        %v1397 = vrot.slane %v1383, %v1396
        %v1398 = vcombine.low %v380, %v388
        %v1399 = vcombine.high %v380, %v388
        %v1401 = vunpack.c.l.s4 1983009808
        %v1402 = vunpack.c.0.s8 %v1401
        %v1403 = vlaneseq
        %v1404 = vshrl.u32 %v1403, 7
        %v1405 = vsub.s32 %v1402, %v1404
        %v1406 = vrot.slane %v1398, %v1405
        %v1408 = vunpack.c.l.s4 1983009808
        %v1409 = vunpack.c.0.s8 %v1408
        %v1410 = vlaneseq
        %v1411 = vshrl.u32 %v1410, 7
        %v1412 = vsub.s32 %v1409, %v1411
        %v1413 = vrot.slane %v1399, %v1412
        %v1414 = vcombine.low %v400, %v408
        %v1415 = vcombine.high %v400, %v408
        %v1417 = vunpack.c.l.s4 1983009808
        %v1418 = vunpack.c.0.s8 %v1417
        %v1419 = vlaneseq
        %v1420 = vshrl.u32 %v1419, 7
        %v1421 = vsub.s32 %v1418, %v1420
        %v1422 = vrot.slane %v1414, %v1421
        %v1424 = vunpack.c.l.s4 1983009808
        %v1425 = vunpack.c.0.s8 %v1424
        %v1426 = vlaneseq
        %v1427 = vshrl.u32 %v1426, 7
        %v1428 = vsub.s32 %v1425, %v1427
        %v1429 = vrot.slane %v1415, %v1428
        %v1430 = vcombine.low %v404, %v412
        %v1431 = vcombine.high %v404, %v412
        %v1433 = vunpack.c.l.s4 1983009808
        %v1434 = vunpack.c.0.s8 %v1433
        %v1435 = vlaneseq
        %v1436 = vshrl.u32 %v1435, 7
        %v1437 = vsub.s32 %v1434, %v1436
        %v1438 = vrot.slane %v1430, %v1437
        %v1440 = vunpack.c.l.s4 1983009808
        %v1441 = vunpack.c.0.s8 %v1440
        %v1442 = vlaneseq
        %v1443 = vshrl.u32 %v1442, 7
        %v1444 = vsub.s32 %v1441, %v1443
        %v1445 = vrot.slane %v1431, %v1444
        %v1446 = vcombine.low %v1390, %v1406
        %v1447 = vcombine.high %v1390, %v1406
        %v1449 = vunpack.c.l.s4 1934713408
        %v1450 = vunpack.c.0.s8 %v1449
        %v1451 = vlaneseq
        %v1452 = vshrl.u32 %v1451, 7
        %v1453 = vsub.s32 %v1450, %v1452
        %v1454 = vrot.slane %v1446, %v1453
        %v1456 = vunpack.c.l.s4 1934713408
        %v1457 = vunpack.c.0.s8 %v1456
        %v1458 = vlaneseq
        %v1459 = vshrl.u32 %v1458, 7
        %v1460 = vsub.s32 %v1457, %v1459
        %v1461 = vrot.slane %v1447, %v1460
        %v1462 = vcombine.low %v1397, %v1413
        %v1463 = vcombine.high %v1397, %v1413
        %v1465 = vunpack.c.l.s4 1934713408
        %v1466 = vunpack.c.0.s8 %v1465
        %v1467 = vlaneseq
        %v1468 = vshrl.u32 %v1467, 7
        %v1469 = vsub.s32 %v1466, %v1468
        %v1470 = vrot.slane %v1462, %v1469
        %v1472 = vunpack.c.l.s4 1934713408
        %v1473 = vunpack.c.0.s8 %v1472
        %v1474 = vlaneseq
        %v1475 = vshrl.u32 %v1474, 7
        %v1476 = vsub.s32 %v1473, %v1475
        %v1477 = vrot.slane %v1463, %v1476
        %v1478 = vcombine.low %v1422, %v1438
        %v1479 = vcombine.high %v1422, %v1438
        %v1481 = vunpack.c.l.s4 1934713408
        %v1482 = vunpack.c.0.s8 %v1481
        %v1483 = vlaneseq
        %v1484 = vshrl.u32 %v1483, 7
        %v1485 = vsub.s32 %v1482, %v1484
        %v1486 = vrot.slane %v1478, %v1485
        %v1488 = vunpack.c.l.s4 1934713408
        %v1489 = vunpack.c.0.s8 %v1488
        %v1490 = vlaneseq
        %v1491 = vshrl.u32 %v1490, 7
        %v1492 = vsub.s32 %v1489, %v1491
        %v1493 = vrot.slane %v1479, %v1492
        %v1494 = vcombine.low %v1429, %v1445
        %v1495 = vcombine.high %v1429, %v1445
        %v1497 = vunpack.c.l.s4 1934713408
        %v1498 = vunpack.c.0.s8 %v1497
        %v1499 = vlaneseq
        %v1500 = vshrl.u32 %v1499, 7
        %v1501 = vsub.s32 %v1498, %v1500
        %v1502 = vrot.slane %v1494, %v1501
        %v1504 = vunpack.c.l.s4 1934713408
        %v1505 = vunpack.c.0.s8 %v1504
        %v1506 = vlaneseq
        %v1507 = vshrl.u32 %v1506, 7
        %v1508 = vsub.s32 %v1505, %v1507
        %v1509 = vrot.slane %v1495, %v1508
        %v1510 = vcombine.low %v1454, %v1486
        %v1511 = vcombine.high %v1454, %v1486
        %v1512 = vcombine.low %v1461, %v1493
        %v1513 = vcombine.high %v1461, %v1493
        %v1514 = vcombine.low %v1470, %v1502
        %v1515 = vcombine.high %v1470, %v1502
        %v1516 = vcombine.low %v1477, %v1509
        %v1517 = vcombine.high %v1477, %v1509
        %v1518 = vcombine.low %v426, %v436
        %v1519 = vcombine.high %v426, %v436
        %v1521 = vunpack.c.l.s4 1983009808
        %v1522 = vunpack.c.0.s8 %v1521
        %v1523 = vlaneseq
        %v1524 = vshrl.u32 %v1523, 7
        %v1525 = vsub.s32 %v1522, %v1524
        %v1526 = vrot.slane %v1518, %v1525
        %v1528 = vunpack.c.l.s4 1983009808
        %v1529 = vunpack.c.0.s8 %v1528
        %v1530 = vlaneseq
        %v1531 = vshrl.u32 %v1530, 7
        %v1532 = vsub.s32 %v1529, %v1531
        %v1533 = vrot.slane %v1519, %v1532
        %v1534 = vcombine.low %v431, %v441
        %v1535 = vcombine.high %v431, %v441
        %v1537 = vunpack.c.l.s4 1983009808
        %v1538 = vunpack.c.0.s8 %v1537
        %v1539 = vlaneseq
        %v1540 = vshrl.u32 %v1539, 7
        %v1541 = vsub.s32 %v1538, %v1540
        %v1542 = vrot.slane %v1534, %v1541
        %v1544 = vunpack.c.l.s4 1983009808
        %v1545 = vunpack.c.0.s8 %v1544
        %v1546 = vlaneseq
        %v1547 = vshrl.u32 %v1546, 7
        %v1548 = vsub.s32 %v1545, %v1547
        %v1549 = vrot.slane %v1535, %v1548
        %v1550 = vcombine.low %v453, %v461
        %v1551 = vcombine.high %v453, %v461
        %v1553 = vunpack.c.l.s4 1983009808
        %v1554 = vunpack.c.0.s8 %v1553
        %v1555 = vlaneseq
        %v1556 = vshrl.u32 %v1555, 7
        %v1557 = vsub.s32 %v1554, %v1556
        %v1558 = vrot.slane %v1550, %v1557
        %v1560 = vunpack.c.l.s4 1983009808
        %v1561 = vunpack.c.0.s8 %v1560
        %v1562 = vlaneseq
        %v1563 = vshrl.u32 %v1562, 7
        %v1564 = vsub.s32 %v1561, %v1563
        %v1565 = vrot.slane %v1551, %v1564
        %v1566 = vcombine.low %v457, %v465
        %v1567 = vcombine.high %v457, %v465
        %v1569 = vunpack.c.l.s4 1983009808
        %v1570 = vunpack.c.0.s8 %v1569
        %v1571 = vlaneseq
        %v1572 = vshrl.u32 %v1571, 7
        %v1573 = vsub.s32 %v1570, %v1572
        %v1574 = vrot.slane %v1566, %v1573
        %v1576 = vunpack.c.l.s4 1983009808
        %v1577 = vunpack.c.0.s8 %v1576
        %v1578 = vlaneseq
        %v1579 = vshrl.u32 %v1578, 7
        %v1580 = vsub.s32 %v1577, %v1579
        %v1581 = vrot.slane %v1567, %v1580
        %v1582 = vcombine.low %v1526, %v1542
        %v1583 = vcombine.high %v1526, %v1542
        %v1585 = vunpack.c.l.s4 1934713408
        %v1586 = vunpack.c.0.s8 %v1585
        %v1587 = vlaneseq
        %v1588 = vshrl.u32 %v1587, 7
        %v1589 = vsub.s32 %v1586, %v1588
        %v1590 = vrot.slane %v1582, %v1589
        %v1592 = vunpack.c.l.s4 1934713408
        %v1593 = vunpack.c.0.s8 %v1592
        %v1594 = vlaneseq
        %v1595 = vshrl.u32 %v1594, 7
        %v1596 = vsub.s32 %v1593, %v1595
        %v1597 = vrot.slane %v1583, %v1596
        %v1598 = vcombine.low %v1533, %v1549
        %v1599 = vcombine.high %v1533, %v1549
        %v1601 = vunpack.c.l.s4 1934713408
        %v1602 = vunpack.c.0.s8 %v1601
        %v1603 = vlaneseq
        %v1604 = vshrl.u32 %v1603, 7
        %v1605 = vsub.s32 %v1602, %v1604
        %v1606 = vrot.slane %v1598, %v1605
        %v1608 = vunpack.c.l.s4 1934713408
        %v1609 = vunpack.c.0.s8 %v1608
        %v1610 = vlaneseq
        %v1611 = vshrl.u32 %v1610, 7
        %v1612 = vsub.s32 %v1609, %v1611
        %v1613 = vrot.slane %v1599, %v1612
        %v1614 = vcombine.low %v1558, %v1574
        %v1615 = vcombine.high %v1558, %v1574
        %v1617 = vunpack.c.l.s4 1934713408
        %v1618 = vunpack.c.0.s8 %v1617
        %v1619 = vlaneseq
        %v1620 = vshrl.u32 %v1619, 7
        %v1621 = vsub.s32 %v1618, %v1620
        %v1622 = vrot.slane %v1614, %v1621
        %v1624 = vunpack.c.l.s4 1934713408
        %v1625 = vunpack.c.0.s8 %v1624
        %v1626 = vlaneseq
        %v1627 = vshrl.u32 %v1626, 7
        %v1628 = vsub.s32 %v1625, %v1627
        %v1629 = vrot.slane %v1615, %v1628
        %v1630 = vcombine.low %v1565, %v1581
        %v1631 = vcombine.high %v1565, %v1581
        %v1633 = vunpack.c.l.s4 1934713408
        %v1634 = vunpack.c.0.s8 %v1633
        %v1635 = vlaneseq
        %v1636 = vshrl.u32 %v1635, 7
        %v1637 = vsub.s32 %v1634, %v1636
        %v1638 = vrot.slane %v1630, %v1637
        %v1640 = vunpack.c.l.s4 1934713408
        %v1641 = vunpack.c.0.s8 %v1640
        %v1642 = vlaneseq
        %v1643 = vshrl.u32 %v1642, 7
        %v1644 = vsub.s32 %v1641, %v1643
        %v1645 = vrot.slane %v1631, %v1644
        %v1646 = vcombine.low %v1590, %v1622
        %v1647 = vcombine.high %v1590, %v1622
        %v1648 = vcombine.low %v1597, %v1629
        %v1649 = vcombine.high %v1597, %v1629
        %v1650 = vcombine.low %v1606, %v1638
        %v1651 = vcombine.high %v1606, %v1638
        %v1652 = vcombine.low %v1613, %v1645
        %v1653 = vcombine.high %v1613, %v1645
        %v1654 = vcombine.low %v477, %v485
        %v1655 = vcombine.high %v477, %v485
        %v1657 = vunpack.c.l.s4 1983009808
        %v1658 = vunpack.c.0.s8 %v1657
        %v1659 = vlaneseq
        %v1660 = vshrl.u32 %v1659, 7
        %v1661 = vsub.s32 %v1658, %v1660
        %v1662 = vrot.slane %v1654, %v1661
        %v1664 = vunpack.c.l.s4 1983009808
        %v1665 = vunpack.c.0.s8 %v1664
        %v1666 = vlaneseq
        %v1667 = vshrl.u32 %v1666, 7
        %v1668 = vsub.s32 %v1665, %v1667
        %v1669 = vrot.slane %v1655, %v1668
        %v1670 = vcombine.low %v481, %v489
        %v1671 = vcombine.high %v481, %v489
        %v1673 = vunpack.c.l.s4 1983009808
        %v1674 = vunpack.c.0.s8 %v1673
        %v1675 = vlaneseq
        %v1676 = vshrl.u32 %v1675, 7
        %v1677 = vsub.s32 %v1674, %v1676
        %v1678 = vrot.slane %v1670, %v1677
        %v1680 = vunpack.c.l.s4 1983009808
        %v1681 = vunpack.c.0.s8 %v1680
        %v1682 = vlaneseq
        %v1683 = vshrl.u32 %v1682, 7
        %v1684 = vsub.s32 %v1681, %v1683
        %v1685 = vrot.slane %v1671, %v1684
        %v1686 = vcombine.low %v1662, %v1678
        %v1687 = vcombine.high %v1662, %v1678
        %v1689 = vunpack.c.l.s4 1934713408
        %v1690 = vunpack.c.0.s8 %v1689
        %v1691 = vlaneseq
        %v1692 = vshrl.u32 %v1691, 7
        %v1693 = vsub.s32 %v1690, %v1692
        %v1694 = vrot.slane %v1686, %v1693
        %v1696 = vunpack.c.l.s4 1934713408
        %v1697 = vunpack.c.0.s8 %v1696
        %v1698 = vlaneseq
        %v1699 = vshrl.u32 %v1698, 7
        %v1700 = vsub.s32 %v1697, %v1699
        %v1701 = vrot.slane %v1687, %v1700
        %v1702 = vcombine.low %v1669, %v1685
        %v1703 = vcombine.high %v1669, %v1685
        %v1705 = vunpack.c.l.s4 1934713408
        %v1706 = vunpack.c.0.s8 %v1705
        %v1707 = vlaneseq
        %v1708 = vshrl.u32 %v1707, 7
        %v1709 = vsub.s32 %v1706, %v1708
        %v1710 = vrot.slane %v1702, %v1709
        %v1712 = vunpack.c.l.s4 1934713408
        %v1713 = vunpack.c.0.s8 %v1712
        %v1714 = vlaneseq
        %v1715 = vshrl.u32 %v1714, 7
        %v1716 = vsub.s32 %v1713, %v1715
        %v1717 = vrot.slane %v1703, %v1716
        %v1718 = vcombine.high %v1694, 0.0
        %v1719 = vcombine.high %v1701, 0.0
        %v1720 = vcombine.high %v1710, 0.0
        %v1721 = vcombine.high %v1717, 0.0
        %1727 = vrot.lane.b32.xlu0 %v627, 16
        %v1728 = vpop.permute.xlu0 %1727
        %1729 = vrot.lane.b32.xlu0 %v763, 16
        %v1730 = vpop.permute.xlu0 %1729
        %1731 = vrot.lane.b32.xlu0 %v899, 16
        %v1732 = vpop.permute.xlu0 %1731
        %1733 = vrot.lane.b32.xlu0 %v1035, 16
        %v1734 = vpop.permute.xlu0 %1733
        %1735 = vrot.lane.b32.xlu0 %v1106, 16
        %v1736 = vpop.permute.xlu0 %1735
        %1747 = vrot.lane.b32.xlu0 %v628, 32
        %v1748 = vpop.permute.xlu0 %1747
        %1749 = vrot.lane.b32.xlu0 %v764, 32
        %v1750 = vpop.permute.xlu0 %1749
        %1751 = vrot.lane.b32.xlu0 %v900, 32
        %v1752 = vpop.permute.xlu0 %1751
        %1753 = vrot.lane.b32.xlu0 %v1036, 32
        %v1754 = vpop.permute.xlu0 %1753
        %1755 = vrot.lane.b32.xlu0 %v1089, 32
        %v1756 = vpop.permute.xlu0 %1755
        %1767 = vrot.lane.b32.xlu0 %v629, 48
        %v1768 = vpop.permute.xlu0 %1767
        %1769 = vrot.lane.b32.xlu0 %v765, 48
        %v1770 = vpop.permute.xlu0 %1769
        %1771 = vrot.lane.b32.xlu0 %v901, 48
        %v1772 = vpop.permute.xlu0 %1771
        %1773 = vrot.lane.b32.xlu0 %v1037, 48
        %v1774 = vpop.permute.xlu0 %1773
        %1775 = vrot.lane.b32.xlu0 %v1107, 48
        %v1776 = vpop.permute.xlu0 %1775
        %1787 = vrot.lane.b32.xlu0 %v630, 64
        %v1788 = vpop.permute.xlu0 %1787
        %1789 = vrot.lane.b32.xlu0 %v766, 64
        %v1790 = vpop.permute.xlu0 %1789
        %1791 = vrot.lane.b32.xlu0 %v902, 64
        %v1792 = vpop.permute.xlu0 %1791
        %1793 = vrot.lane.b32.xlu0 %v1038, 64
        %v1794 = vpop.permute.xlu0 %1793
        %1795 = vrot.lane.b32.xlu0 %v1098, 64
        %v1796 = vpop.permute.xlu0 %1795
        %1807 = vrot.lane.b32.xlu0 %v631, 80
        %v1808 = vpop.permute.xlu0 %1807
        %1809 = vrot.lane.b32.xlu0 %v767, 80
        %v1810 = vpop.permute.xlu0 %1809
        %1811 = vrot.lane.b32.xlu0 %v903, 80
        %v1812 = vpop.permute.xlu0 %1811
        %1813 = vrot.lane.b32.xlu0 %v1039, 80
        %v1814 = vpop.permute.xlu0 %1813
        %1815 = vrot.lane.b32.xlu0 %v1108, 80
        %v1816 = vpop.permute.xlu0 %1815
        %1827 = vrot.lane.b32.xlu0 %v632, 96
        %v1828 = vpop.permute.xlu0 %1827
        %1829 = vrot.lane.b32.xlu0 %v768, 96
        %v1830 = vpop.permute.xlu0 %1829
        %1831 = vrot.lane.b32.xlu0 %v904, 96
        %v1832 = vpop.permute.xlu0 %1831
        %1833 = vrot.lane.b32.xlu0 %v1040, 96
        %v1834 = vpop.permute.xlu0 %1833
        %1835 = vrot.lane.b32.xlu0 %v1105, 96
        %v1836 = vpop.permute.xlu0 %1835
        %1847 = vrot.lane.b32.xlu0 %v633, 112
        %v1848 = vpop.permute.xlu0 %1847
        %1849 = vrot.lane.b32.xlu0 %v769, 112
        %v1850 = vpop.permute.xlu0 %1849
        %1851 = vrot.lane.b32.xlu0 %v905, 112
        %v1852 = vpop.permute.xlu0 %1851
        %1853 = vrot.lane.b32.xlu0 %v1041, 112
        %v1854 = vpop.permute.xlu0 %1853
        %1855 = vrot.lane.b32.xlu0 %v1109, 112
        %v1856 = vpop.permute.xlu0 %1855
        %1867 = vrot.lane.b32.xlu0 %v1239, 16
        %v1868 = vpop.permute.xlu0 %1867
        %1869 = vrot.lane.b32.xlu0 %v1375, 16
        %v1870 = vpop.permute.xlu0 %1869
        %1871 = vrot.lane.b32.xlu0 %v1511, 16
        %v1872 = vpop.permute.xlu0 %1871
        %1873 = vrot.lane.b32.xlu0 %v1647, 16
        %v1874 = vpop.permute.xlu0 %1873
        %1875 = vrot.lane.b32.xlu0 %v1718, 16
        %v1876 = vpop.permute.xlu0 %1875
        %1887 = vrot.lane.b32.xlu0 %v1240, 32
        %v1888 = vpop.permute.xlu0 %1887
        %1889 = vrot.lane.b32.xlu0 %v1376, 32
        %v1890 = vpop.permute.xlu0 %1889
        %1891 = vrot.lane.b32.xlu0 %v1512, 32
        %v1892 = vpop.permute.xlu0 %1891
        %1893 = vrot.lane.b32.xlu0 %v1648, 32
        %v1894 = vpop.permute.xlu0 %1893
        %1895 = vrot.lane.b32.xlu0 %v1701, 32
        %v1896 = vpop.permute.xlu0 %1895
        %1907 = vrot.lane.b32.xlu0 %v1241, 48
        %v1908 = vpop.permute.xlu0 %1907
        %1909 = vrot.lane.b32.xlu0 %v1377, 48
        %v1910 = vpop.permute.xlu0 %1909
        %1911 = vrot.lane.b32.xlu0 %v1513, 48
        %v1912 = vpop.permute.xlu0 %1911
        %1913 = vrot.lane.b32.xlu0 %v1649, 48
        %v1914 = vpop.permute.xlu0 %1913
        %1915 = vrot.lane.b32.xlu0 %v1719, 48
        %v1916 = vpop.permute.xlu0 %1915
        %1927 = vrot.lane.b32.xlu0 %v1242, 64
        %v1928 = vpop.permute.xlu0 %1927
        %1929 = vrot.lane.b32.xlu0 %v1378, 64
        %v1930 = vpop.permute.xlu0 %1929
        %1931 = vrot.lane.b32.xlu0 %v1514, 64
        %v1932 = vpop.permute.xlu0 %1931
        %1933 = vrot.lane.b32.xlu0 %v1650, 64
        %v1934 = vpop.permute.xlu0 %1933
        %1935 = vrot.lane.b32.xlu0 %v1710, 64
        %v1936 = vpop.permute.xlu0 %1935
        %1947 = vrot.lane.b32.xlu0 %v1243, 80
        %v1948 = vpop.permute.xlu0 %1947
        %1949 = vrot.lane.b32.xlu0 %v1379, 80
        %v1950 = vpop.permute.xlu0 %1949
        %1951 = vrot.lane.b32.xlu0 %v1515, 80
        %v1952 = vpop.permute.xlu0 %1951
        %1953 = vrot.lane.b32.xlu0 %v1651, 80
        %v1954 = vpop.permute.xlu0 %1953
        %1955 = vrot.lane.b32.xlu0 %v1720, 80
        %v1956 = vpop.permute.xlu0 %1955
        %1967 = vrot.lane.b32.xlu0 %v1244, 96
        %v1968 = vpop.permute.xlu0 %1967
        %1969 = vrot.lane.b32.xlu0 %v1380, 96
        %v1970 = vpop.permute.xlu0 %1969
        %1971 = vrot.lane.b32.xlu0 %v1516, 96
        %v1972 = vpop.permute.xlu0 %1971
        %1973 = vrot.lane.b32.xlu0 %v1652, 96
        %v1974 = vpop.permute.xlu0 %1973
        %1975 = vrot.lane.b32.xlu0 %v1717, 96
        %v1976 = vpop.permute.xlu0 %1975
        %1987 = vrot.lane.b32.xlu0 %v1245, 112
        %v1988 = vpop.permute.xlu0 %1987
        %1989 = vrot.lane.b32.xlu0 %v1381, 112
        %v1990 = vpop.permute.xlu0 %1989
        %1991 = vrot.lane.b32.xlu0 %v1517, 112
        %v1992 = vpop.permute.xlu0 %1991
        %1993 = vrot.lane.b32.xlu0 %v1653, 112
        %v1994 = vpop.permute.xlu0 %1993
        %1995 = vrot.lane.b32.xlu0 %v1721, 112
        %v1996 = vpop.permute.xlu0 %1995
        %vm2002 = vcmask 130048
        %v2003 = vsel %vm2002, %v626, %v1728
        %v2004 = vsel %vm2002, %v762, %v1730
        %v2005 = vsel %vm2002, %v898, %v1732
        %v2006 = vsel %vm2002, %v1034, %v1734
        %v2007 = vsel %vm2002, %v1082, %v1736
        %vm2008 = vcmask 261120
        %v2009 = vsel %vm2008, %v2003, %v1748
        %v2010 = vsel %vm2008, %v2004, %v1750
        %v2011 = vsel %vm2008, %v2005, %v1752
        %v2012 = vsel %vm2008, %v2006, %v1754
        %v2013 = vsel %vm2008, %v2007, %v1756
        %vm2014 = vcmask 392192
        %v2015 = vsel %vm2014, %v2009, %v1768
        %v2016 = vsel %vm2014, %v2010, %v1770
        %v2017 = vsel %vm2014, %v2011, %v1772
        %v2018 = vsel %vm2014, %v2012, %v1774
        %v2019 = vsel %vm2014, %v2013, %v1776
        %vm2020 = vcmask 523264
        %v2021 = vsel %vm2020, %v2015, %v1788
        %v2022 = vsel %vm2020, %v2016, %v1790
        %v2023 = vsel %vm2020, %v2017, %v1792
        %v2024 = vsel %vm2020, %v2018, %v1794
        %v2025 = vsel %vm2020, %v2019, %v1796
        %vm2026 = vcmask 654336
        %v2027 = vsel %vm2026, %v2021, %v1808
        %v2028 = vsel %vm2026, %v2022, %v1810
        %v2029 = vsel %vm2026, %v2023, %v1812
        %v2030 = vsel %vm2026, %v2024, %v1814
        %v2031 = vsel %vm2026, %v2025, %v1816
        %vm2032 = vcmask 785408
        %v2033 = vsel %vm2032, %v2027, %v1828
        %v2034 = vsel %vm2032, %v2028, %v1830
        %v2035 = vsel %vm2032, %v2029, %v1832
        %v2036 = vsel %vm2032, %v2030, %v1834
        %v2037 = vsel %vm2032, %v2031, %v1836
        %vm2038 = vcmask 916480
        %v2039 = vsel %vm2038, %v2033, %v1848
        %v2040 = vsel %vm2038, %v2034, %v1850
        %v2041 = vsel %vm2038, %v2035, %v1852
        %v2042 = vsel %vm2038, %v2036, %v1854
        %v2043 = vsel %vm2038, %v2037, %v1856
        %v2044 = vsel %vm2002, %v1238, %v1868
        %v2045 = vsel %vm2002, %v1374, %v1870
        %v2046 = vsel %vm2002, %v1510, %v1872
        %v2047 = vsel %vm2002, %v1646, %v1874
        %v2048 = vsel %vm2002, %v1694, %v1876
        %v2049 = vsel %vm2008, %v2044, %v1888
        %v2050 = vsel %vm2008, %v2045, %v1890
        %v2051 = vsel %vm2008, %v2046, %v1892
        %v2052 = vsel %vm2008, %v2047, %v1894
        %v2053 = vsel %vm2008, %v2048, %v1896
        %v2054 = vsel %vm2014, %v2049, %v1908
        %v2055 = vsel %vm2014, %v2050, %v1910
        %v2056 = vsel %vm2014, %v2051, %v1912
        %v2057 = vsel %vm2014, %v2052, %v1914
        %v2058 = vsel %vm2014, %v2053, %v1916
        %v2059 = vsel %vm2020, %v2054, %v1928
        %v2060 = vsel %vm2020, %v2055, %v1930
        %v2061 = vsel %vm2020, %v2056, %v1932
        %v2062 = vsel %vm2020, %v2057, %v1934
        %v2063 = vsel %vm2020, %v2058, %v1936
        %v2064 = vsel %vm2026, %v2059, %v1948
        %v2065 = vsel %vm2026, %v2060, %v1950
        %v2066 = vsel %vm2026, %v2061, %v1952
        %v2067 = vsel %vm2026, %v2062, %v1954
        %v2068 = vsel %vm2026, %v2063, %v1956
        %v2069 = vsel %vm2032, %v2064, %v1968
        %v2070 = vsel %vm2032, %v2065, %v1970
        %v2071 = vsel %vm2032, %v2066, %v1972
        %v2072 = vsel %vm2032, %v2067, %v1974
        %v2073 = vsel %vm2032, %v2068, %v1976
        %v2074 = vsel %vm2038, %v2069, %v1988
        %v2075 = vsel %vm2038, %v2070, %v1990
        %v2076 = vsel %vm2038, %v2071, %v1992
        %v2077 = vsel %vm2038, %v2072, %v1994
        %v2078 = vsel %vm2038, %v2073, %v1996
        %v2079 = vld [vmem:[%s1] sm:$0xff]
        %vm2080 = vcmask 293888
        %v2082 = vsel %vm2080, %v2079, 0
        %vm2084 = vcmask 1043456
        %v2086 = vsel %vm2084, %v2043, 0
        %v2089 = vsel %vm2084, %v2078, 0
        %2091 = vmatprep.subr.mxu0 0.0
        %2092 = vmatpush1.msra.mxu0 0.0
        %2093 = vmatprep.subr.mxu0 0.0
        %2094 = vmatpush1.msra.mxu0 0.0
        %2095 = vmatprep.subr.mxu0 0.0
        %2096 = vmatpush1.msra.mxu0 0.0
        %2097 = vmatprep.subr.mxu0 0.0
        %2098 = vmatpush1.msra.mxu0 0.0
        %2099 = vmatprep.subr.mxu0 0.0
        %2100 = vmatpush1.msra.mxu0 0.0
        %2101 = vmatprep.subr.mxu0 0.0
        %2102 = vmatpush1.msra.mxu0 0.0
        %2103 = vmatprep.subr.mxu0 0.0
        %2104 = vmatpush1.msra.mxu0 0.0
        %2105 = vmatprep.subr.mxu0 0.0
        %2106 = vmatpush1.msra.mxu0 0.0
        %2107 = vmatprep.subr.mxu0 0.0
        %2108 = vmatpush1.msra.mxu0 0.0
        %2109 = vmatprep.subr.mxu0 0.0
        %2110 = vmatpush1.msra.mxu0 0.0
        %2111 = vmatprep.subr.mxu0 0.0
        %2112 = vmatpush1.msra.mxu0 0.0
        %2113 = vmatprep.subr.mxu0 %v2089
        %2114 = vmatpush1.msra.mxu0 %v2086
        %2115 = vmatprep.subr.mxu0 %v2077
        %2116 = vmatpush1.msra.mxu0 %v2042
        %2117 = vmatprep.subr.mxu0 %v2076
        %2118 = vmatpush1.msra.mxu0 %v2041
        %2119 = vmatprep.subr.mxu0 %v2075
        %2120 = vmatpush1.msra.mxu0 %v2040
        %2121 = vmatprep.subr.mxu0 %v2074
        %2122 = vmatpush1.msra.mxu0 %v2039
        %2123 = vmatprep.subr.mxu0 0.0
        %2124 = vmatpush2.msra.mxu0 0.0
        %2125 = vmatprep.subr.mxu0 0.0
        %2126 = vmatpush2.msra.mxu0 0.0
        %2127 = vmatprep.subr.mxu0 0.0
        %2128 = vmatpush2.msra.mxu0 0.0
        %2129 = vmatprep.subr.mxu0 0.0
        %2130 = vmatpush2.msra.mxu0 0.0
        %2131 = vmatprep.subr.mxu0 0.0
        %2132 = vmatpush2.msra.mxu0 0.0
        %2133 = vmatprep.subr.mxu0 0.0
        %2134 = vmatpush2.msra.mxu0 0.0
        %2135 = vmatprep.subr.mxu0 0.0
        %2136 = vmatpush2.msra.mxu0 0.0
        %2137 = vmatprep.subr.mxu0 0.0
        %2138 = vmatpush2.msra.mxu0 0.0
        %2139 = vmatprep.subr.mxu0 0.0
        %2140 = vmatpush2.msra.mxu0 0.0
        %2141 = vmatprep.subr.mxu0 0.0
        %2142 = vmatpush2.msra.mxu0 0.0
        %2143 = vmatprep.subr.mxu0 0.0
        %2144 = vmatpush2.msra.mxu0 0.0
        %2145 = vmatprep.subr.mxu0 0.0
        %2146 = vmatpush2.msra.mxu0 0.0
        %2147 = vmatprep.subr.mxu0 0.0
        %2148 = vmatpush2.msra.mxu0 0.0
        %2149 = vmatprep.subr.mxu0 0.0
        %2150 = vmatpush2.msra.mxu0 0.0
        %2151 = vmatprep.subr.mxu0 0.0
        %2152 = vmatpush2.msra.mxu0 0.0
        %2153 = vmatprep.subr.mxu0 0.0
        %2154 = vmatpush2.msra.mxu0 0.0
        %2155 = vmatprep.mubr.f32.mxu0 0.0
        %2156 = vmatmul.mubr.f32.gmra.mxu0 %v2082
        %v2157 = vpop.f32.mrf.mxu0
        %v2158 = vadd.f32 0.0, %v2157
        %v2159 = vpop.f32.mrf.mxu0
        %v2160 = vadd.f32 0.0, %v2159
        %2161 = vdwg.mxu0
        %2162 = vst [vmem:[%s188] sm:$0xff] %v2158
        %2163 = vst [vmem:[%s188 + $0x8] sm:$0xff] %v2160
        %p2164 = scmp.eq.s32.totalorder %s18, 0
        // Predicated region
        $region33: #{conv_bn_relu.2} parent=27 // pred_check
          %p2165 = pneg %p2164
        $region34: #{conv_bn_relu.2} parent=27 // pred_check_branch
          %2167 = sbr.rel (%p2165) target = $region36
        $region35: #{conv_bn_relu.2} parent=27 // pred_region
          %vm2168 = vcmask 15360
          %2169 = vst.msk [vmem:[%s3] sm:$0xff] %vm2168, 0.0
        $region36: #{conv_bn_relu.2} parent=27 // pred_fallthru
          _
        %v2170 = vadd.f32 %v2158, %v2160
        %2171 = vadd.xlane.f32.xlu0 %v2170
        %v2172 = vpop.xlane.xlu0 %2171
        %v2173 = vmul.f32 %v2158, %v2158
        %v2174 = vmul.f32 %v2160, %v2160
        %v2175 = vadd.f32 %v2173, %v2174
        %2176 = vadd.xlane.f32.xlu0 %v2175
        %v2177 = vpop.xlane.xlu0 %2176
        %v2178 = vld [vmem:[%s3] sm:$0xff]
        %v2179 = vsel %vm229, %v2172, %v2177
        %v2180 = vadd.f32 %v2178, %v2179
        %vm2181 = vcmask 15360
        %2182 = vst.msk [vmem:[%s3] sm:$0xff] %vm2181, %v2180
        %p2183 = scmp.lt.s32.totalorder %s18, 1
        %s2184 = scalar_select %p2183, %s18, 1
        %s2185 = smul.addr %s2184, 2
        %s2186 = smul.addr %s2185, 8
        %s2187 = scalar_lea.vmem %s2, %s2186
        // Predicated region
        $region37: #{conv_bn_relu.2} parent=27 // pred_check
          %p2188 = pneg %p83
        $region38: #{conv_bn_relu.2} parent=27 // pred_check_branch
          %2190 = sbr.rel (%p2188) target = $region40
        $region39: #{conv_bn_relu.2} parent=27 // pred_region
          _
        $region40: #{conv_bn_relu.2} parent=27 // pred_fallthru
          _
        // Predicated region
        $region41: #{conv_bn_relu.2} parent=27 // pred_check
          %p2191 = pneg %p104
        $region42: #{conv_bn_relu.2} parent=27 // pred_check_branch
          %2193 = sbr.rel (%p2191) target = $region44
        $region43: #{conv_bn_relu.2} parent=27 // pred_region
          _
        $region44: #{conv_bn_relu.2} parent=27 // pred_fallthru
          _
        // Predicated region
        $region45: #{conv_bn_relu.2} parent=27 // pred_check
          %p2194 = pneg %p104
        $region46: #{conv_bn_relu.2} parent=27 // pred_check_branch
          %2196 = sbr.rel (%p2194) target = $region48
        $region47: #{conv_bn_relu.2} parent=27 // pred_region
          _
        $region48: #{conv_bn_relu.2} parent=27 // pred_fallthru
          _
      $region28: #{conv_bn_relu.2} parent=5 // pred_fallthru
        _
      %p2197 = scmp.le.s32.totalorder 2, %s13
      // Predicated region
      $region49: #{conv_bn_relu.2} parent=5 // pred_check
        %p2198 = pneg %p2197
      $region50: #{conv_bn_relu.2} parent=5 // pred_check_branch
        %2200 = sbr.rel (%p2198) target = $region52
      $region51: #{conv_bn_relu.2} parent=5 // pred_region
        %s2201 = ssub.s32 %s13, 2
        // Predicated region
        $region53: #{conv_bn_relu.2} parent=51 // pred_check
          %p2202 = pneg %p89
        $region54: #{conv_bn_relu.2} parent=51 // pred_check_branch
          %2204 = sbr.rel (%p2202) target = $region56
        $region55: #{conv_bn_relu.2} parent=51 // pred_region
          %p2205 = scmp.lt.s32.totalorder %s19, 1
          %s2206 = scalar_select %p2205, %s19, 1
          %s2207 = smul.addr %s2206, 2
          %s2208 = smul.addr %s2207, 8
          %s2209 = scalar_lea.vmem %s2, %s2208
        $region56: #{conv_bn_relu.2} parent=51 // pred_fallthru
          _
      $region52: #{conv_bn_relu.2} parent=5 // pred_fallthru
        _
    $region6: #{conv_bn_relu.2} parent=1 // loop_footer
      %s17 = sadd.s32 1, %s13
    $region7: #{conv_bn_relu.2} parent=1 // loop_footer_branch
      %12 = sbr.rel target = $region3
    $region8: #{conv_bn_relu.2} parent=1 // loop_exit
      _
    %2210 = vsyncpa [#allocation3], 1
    %s2211 = scalar_lea.sflag [#allocation3], 1
    %2212 = vsyncpa %s2211, 1

</llo_original>
